<compile_context>
chip_gen: v7x
topology: tpu7x:2x2x1
jax: 0.10.0
libtpu: 0.0.40
codegen_flags: <defaults>
</compile_context>

<pallas_src>
import functools

import jax
import jax.numpy as jnp
from jax.experimental import pallas as pl
from jax.experimental.pallas import tpu as pltpu


# ---------------------------------------------------------------------------
# Fused kernel: one batch element per grid step, everything VMEM-resident.
#   x_ref : (1, H, W*C)    input in "rows" layout (pixel-major, channel minor)
#   bd1/bd2 : block-diagonal channel-MLP weights, b1/b2 tiled biases
#   a1/a2 : banded 7x7 conv weights (per kernel-row), bc1/bc2 tiled biases
#   o_ref : (1, H, W*C)
#   x1p_ref / h1p_ref : VMEM scratch, row-padded (3-row zero halo) activations
# ---------------------------------------------------------------------------
def _gam_fused_kernel(x_ref, bd1_ref, b1_ref, bd2_ref, b2_ref,
                      a1_ref, bc1_ref, a2_ref, bc2_ref,
                      o_ref, x1p_ref, h1p_ref, *, H, W, C, Cr, KH):
    pad = KH // 2

    # ---- 1) channel attention MLP (block-diagonal form) + gate -------------
    x = x_ref[0]                                                   # (H, W*C)
    h = jnp.dot(x, bd1_ref[...], preferred_element_type=jnp.float32) + b1_ref[...]
    h = jnp.maximum(h, 0.0)                                        # (H, W*Cr)
    att = jnp.dot(h, bd2_ref[...], preferred_element_type=jnp.float32) + b2_ref[...]
    x1 = x * att                                                   # (H, W*C)

    # ---- 2a) conv1 7x7 (C -> Cr) + folded BN + ReLU -------------------------
    # Height halo: zero-padded VMEM scratch; width halo: baked into a1.
    x1p_ref[...] = jnp.zeros((H + KH - 1, W * C), jnp.float32)
    x1p_ref[pl.ds(pad, H), :] = x1
    acc1 = jnp.zeros((H, W * Cr), jnp.float32)
    for kh in range(KH):                                           # 7 matmuls, K = W*C
        acc1 = acc1 + jnp.dot(x1p_ref[pl.ds(kh, H), :], a1_ref[kh],
                              preferred_element_type=jnp.float32)
    h1 = jnp.maximum(acc1 + bc1_ref[...], 0.0)                     # (H, W*Cr)

    # ---- 2b) conv2 7x7 (Cr -> C) + folded BN, sigmoid, final gate -----------
    h1p_ref[...] = jnp.zeros((H + KH - 1, W * Cr), jnp.float32)
    h1p_ref[pl.ds(pad, H), :] = h1
    acc2 = jnp.zeros((H, W * C), jnp.float32)
    for kh in range(KH):                                           # 7 matmuls, K = W*Cr
        acc2 = acc2 + jnp.dot(h1p_ref[pl.ds(kh, H), :], a2_ref[kh],
                              preferred_element_type=jnp.float32)
    o_ref[0] = x1 * jax.nn.sigmoid(acc2 + bc2_ref[...])            # (H, W*C)


# ---------------------------------------------------------------------------
# Plain-JAX glue: BN folding, block-diagonal MLP weights, banded conv weights.
# ---------------------------------------------------------------------------
def fold_bn(w_hwio, bias, gamma, beta, mean, var, eps=1e-5):
    scale = gamma / jnp.sqrt(var + eps)                            # (Cout,)
    return w_hwio * scale[None, None, None, :], (bias - mean) * scale + beta


def build_banded_conv(w_hwio, W_out):
    """(KH,KW,Cin,Cout) -> (KH, W_out*Cin, W_out*Cout) banded matrices.

    A[kh, wi*Cin+ci, wo*Cout+co] = w[kh, wi-wo+KW//2, ci, co] (0 if tap OOB),
    so out_rows[h] = sum_kh x_rows_padded[h+kh] @ A[kh] is the SAME-padded conv
    (width zero-padding is implicit via the zero entries of A).
    """
    KH, KW, Cin, Cout = w_hwio.shape
    pad = KW // 2
    wi = jnp.arange(W_out)[:, None]
    wo = jnp.arange(W_out)[None, :]
    kw = wi - wo + pad                                             # (W, W)
    valid = (kw >= 0) & (kw < KW)
    kw_c = jnp.clip(kw, 0, KW - 1)
    g = w_hwio[:, kw_c, :, :]                                      # (KH, W, W, Cin, Cout)
    g = jnp.where(valid[None, :, :, None, None], g, 0.0)
    g = jnp.transpose(g, (0, 1, 3, 2, 4))                          # (KH, W, Cin, W, Cout)
    return g.reshape(KH, W_out * Cin, W_out * Cout)


# ---------------------------------------------------------------------------
# Full GAMBlock forward (NCHW in / NCHW out, matching PyTorch).
# ---------------------------------------------------------------------------
def gam_block_forward(x_nchw, p):
    B, C, H, W = x_nchw.shape
    Cr = p["w1"].shape[1]
    Cout = p["wc2"].shape[-1]
    KH = p["wc1"].shape[0]
    assert Cout == C, "final gate (x * spatial_att) requires out_channels == in_channels"

    # Single layout pass NCHW -> rows layout (B, H, W*C); last dim is lane-dense.
    x_rows = jnp.transpose(x_nchw, (0, 2, 3, 1)).reshape(B, H, W * C).astype(jnp.float32)

    # Channel-MLP weights in block-diagonal (rows-layout) form.
    eye_w = jnp.eye(W, dtype=jnp.float32)
    bd1 = jnp.kron(eye_w, p["w1"].astype(jnp.float32))             # (W*C,  W*Cr)
    bd2 = jnp.kron(eye_w, p["w2"].astype(jnp.float32))             # (W*Cr, W*C)
    b1t = jnp.tile(p["b1"], W).reshape(1, W * Cr)
    b2t = jnp.tile(p["b2"], W).reshape(1, W * C)

    # Fold BN into conv weights/bias and build banded conv matrices.
    wc1f, bc1f = fold_bn(p["wc1"], p["bc1"], p["g1"], p["beta1"], p["m1"], p["v1"])
    wc2f, bc2f = fold_bn(p["wc2"], p["bc2"], p["g2"], p["beta2"], p["m2"], p["v2"])
    a1 = build_banded_conv(wc1f, W)                                # (7, W*C,  W*Cr)
    a2 = build_banded_conv(wc2f, W)                                # (7, W*Cr, W*C)
    bc1t = jnp.tile(bc1f, W).reshape(1, W * Cr)
    bc2t = jnp.tile(bc2f, W).reshape(1, W * C)

    kern = functools.partial(_gam_fused_kernel, H=H, W=W, C=C, Cr=Cr, KH=KH)
    out_rows = pl.pallas_call(
        kern,
        out_shape=jax.ShapeDtypeStruct((B, H, W * C), jnp.float32),
        grid_spec=pltpu.PrefetchScalarGridSpec(
            num_scalar_prefetch=0,
            grid=(B,),
            in_specs=[
                pl.BlockSpec((1, H, W * C), lambda b: (b, 0, 0)),       # x rows
                pl.BlockSpec((W * C, W * Cr), lambda b: (0, 0)),        # bd1
                pl.BlockSpec((1, W * Cr), lambda b: (0, 0)),            # b1 tiled
                pl.BlockSpec((W * Cr, W * C), lambda b: (0, 0)),        # bd2
                pl.BlockSpec((1, W * C), lambda b: (0, 0)),             # b2 tiled
                pl.BlockSpec((KH, W * C, W * Cr), lambda b: (0, 0, 0)),  # conv1 banded
                pl.BlockSpec((1, W * Cr), lambda b: (0, 0)),            # conv1 bias
                pl.BlockSpec((KH, W * Cr, W * C), lambda b: (0, 0, 0)),  # conv2 banded
                pl.BlockSpec((1, W * C), lambda b: (0, 0)),             # conv2 bias
            ],
            out_specs=pl.BlockSpec((1, H, W * C), lambda b: (b, 0, 0)),
            scratch_shapes=[
                pltpu.VMEM((H + KH - 1, W * C), jnp.float32),   # row-padded x1
                pltpu.VMEM((H + KH - 1, W * Cr), jnp.float32),  # row-padded h1
            ],
        ),
        compiler_params=pltpu.CompilerParams(dimension_semantics=("parallel",)),
    )(x_rows, bd1, b1t, bd2, b2t, a1, bc1t, a2, bc2t)

    return jnp.transpose(out_rows.reshape(B, H, W, C), (0, 3, 1, 2))


# ---------------------------------------------------------------------------
# Deterministic parameter construction.
# ---------------------------------------------------------------------------
def make_params(key, in_channels, out_channels, ratio=4):
    cr = int(in_channels / ratio)
    ks = jax.random.split(key, 12)
    p = {}
    # channel attention (Linear stored as (in, out); y = x @ W + b)
    p["w1"] = 0.1 * jax.random.normal(ks[0], (in_channels, cr), jnp.float32)
    p["b1"] = 0.1 * jax.random.normal(ks[1], (cr,), jnp.float32)
    p["w2"] = 0.1 * jax.random.normal(ks[2], (cr, in_channels), jnp.float32)
    p["b2"] = 0.1 * jax.random.normal(ks[3], (in_channels,), jnp.float32)
    # spatial attention conv1 (HWIO) + BN
    p["wc1"] = 0.05 * jax.random.normal(ks[4], (7, 7, in_channels, cr), jnp.float32)
    p["bc1"] = 0.05 * jax.random.normal(ks[5], (cr,), jnp.float32)
    p["g1"] = 1.0 + 0.1 * jax.random.normal(ks[6], (cr,), jnp.float32)
    p["beta1"] = 0.1 * jax.random.normal(ks[7], (cr,), jnp.float32)
    p["m1"] = 0.05 * jax.random.normal(ks[8], (cr,), jnp.float32)
    p["v1"] = 0.5 + jnp.abs(0.2 * jax.random.normal(ks[9], (cr,), jnp.float32))
    # spatial attention conv2 (HWIO) + BN
    p["wc2"] = 0.05 * jax.random.normal(ks[10], (7, 7, cr, out_channels), jnp.float32)
    p["bc2"] = 0.05 * jax.random.normal(ks[11], (out_channels,), jnp.float32)
    p["g2"] = jnp.ones((out_channels,), jnp.float32) * 1.1
    p["beta2"] = jnp.linspace(-0.1, 0.1, out_channels).astype(jnp.float32)
    p["m2"] = jnp.linspace(-0.05, 0.05, out_channels).astype(jnp.float32)
    p["v2"] = jnp.linspace(0.8, 1.2, out_channels).astype(jnp.float32)
    return p


# ---------------------------------------------------------------------------
# Pure-JAX reference for verification.
# ---------------------------------------------------------------------------
def gam_block_reference(x_nchw, p):
    x_nhwc = jnp.transpose(x_nchw, (0, 2, 3, 1)).astype(jnp.float32)
    h = jnp.maximum(x_nhwc @ p["w1"] + p["b1"], 0.0)
    att = h @ p["w2"] + p["b2"]
    x1 = x_nhwc * att

    wc1f, bc1f = fold_bn(p["wc1"], p["bc1"], p["g1"], p["beta1"], p["m1"], p["v1"])
    wc2f, bc2f = fold_bn(p["wc2"], p["bc2"], p["g2"], p["beta2"], p["m2"], p["v2"])
    dn = ("NHWC", "HWIO", "NHWC")
    h1 = jax.lax.conv_general_dilated(x1, wc1f, (1, 1), "SAME",
                                      dimension_numbers=dn) + bc1f
    h1 = jnp.maximum(h1, 0.0)
    s = jax.lax.conv_general_dilated(h1, wc2f, (1, 1), "SAME",
                                     dimension_numbers=dn) + bc2f
    out = x1 * jax.nn.sigmoid(s)
    return jnp.transpose(out, (0, 3, 1, 2))


if __name__ == "__main__":
    B, C, H, W = 2, 8, 16, 16          # in_channels = out_channels = 8, ratio = 4
    key = jax.random.PRNGKey(0)
    kx, kp = jax.random.split(key)
    x = jax.random.normal(kx, (B, C, H, W), jnp.float32)
    params = make_params(kp, in_channels=C, out_channels=C, ratio=4)

    out = jax.block_until_ready(gam_block_forward(x, params))
    ref = jax.block_until_ready(gam_block_reference(x, params))

    assert out.shape == (B, C, H, W)
    assert jnp.allclose(out, ref, atol=2e-4, rtol=2e-4), \
        f"max err {jnp.max(jnp.abs(out - ref))}"
    print("KERNEL_OK")
</pallas_src>

<mosaic_0001>
module attributes {stable_mosaic.version = 11 : i64} {
  func.func @_gam_fused_kernel(%arg0: i32, %arg1: memref<1x16x128xf32, #tpu.memory_space<vmem>>, %arg2: memref<128x32xf32, #tpu.memory_space<vmem>>, %arg3: memref<1x32xf32, #tpu.memory_space<vmem>>, %arg4: memref<32x128xf32, #tpu.memory_space<vmem>>, %arg5: memref<1x128xf32, #tpu.memory_space<vmem>>, %arg6: memref<7x128x32xf32, #tpu.memory_space<vmem>>, %arg7: memref<1x32xf32, #tpu.memory_space<vmem>>, %arg8: memref<7x32x128xf32, #tpu.memory_space<vmem>>, %arg9: memref<1x128xf32, #tpu.memory_space<vmem>>, %arg10: memref<1x16x128xf32, #tpu.memory_space<vmem>>, %arg11: memref<22x128xf32, #tpu.memory_space<vmem>>, %arg12: memref<22x32xf32, #tpu.memory_space<vmem>>) attributes {dimension_semantics = [#tpu.dimension_semantics<parallel>], iteration_bounds = array<i64: 2>, scalar_prefetch = 0 : i64, scratch_operands = 2 : i64, tpu.core_type = #tpu.core_type<tc>, window_params = [{transform_indices = @transform_0, window_bounds = array<i64: 1, 16, 128>}, {pipeline_mode = #tpu.pipeline_mode<synchronous>, transform_indices = @transform_1, window_bounds = array<i64: 128, 32>}, {pipeline_mode = #tpu.pipeline_mode<synchronous>, transform_indices = @transform_2, window_bounds = array<i64: 1, 32>}, {pipeline_mode = #tpu.pipeline_mode<synchronous>, transform_indices = @transform_3, window_bounds = array<i64: 32, 128>}, {pipeline_mode = #tpu.pipeline_mode<synchronous>, transform_indices = @transform_4, window_bounds = array<i64: 1, 128>}, {pipeline_mode = #tpu.pipeline_mode<synchronous>, transform_indices = @transform_5, window_bounds = array<i64: 7, 128, 32>}, {pipeline_mode = #tpu.pipeline_mode<synchronous>, transform_indices = @transform_6, window_bounds = array<i64: 1, 32>}, {pipeline_mode = #tpu.pipeline_mode<synchronous>, transform_indices = @transform_7, window_bounds = array<i64: 7, 32, 128>}, {pipeline_mode = #tpu.pipeline_mode<synchronous>, transform_indices = @transform_8, window_bounds = array<i64: 1, 128>}, {transform_indices = @transform_9, window_bounds = array<i64: 1, 16, 128>}]} {
    %c0 = arith.constant 0 : index
    %c0_0 = arith.constant 0 : index
    %c0_1 = arith.constant 0 : index
    %0 = vector.load %arg1[%c0, %c0_0, %c0_1] : memref<1x16x128xf32, #tpu.memory_space<vmem>>, vector<1x16x128xf32>
    %1 = vector.shape_cast %0 : vector<1x16x128xf32> to vector<16x128xf32>
    %c0_2 = arith.constant 0 : index
    %c0_3 = arith.constant 0 : index
    %2 = vector.load %arg2[%c0_2, %c0_3] : memref<128x32xf32, #tpu.memory_space<vmem>>, vector<128x32xf32>
    %cst = arith.constant dense<0.000000e+00> : vector<16x32xf32>
    %3 = tpu.matmul %1, %2, %cst {dimension_numbers = #tpu.dot_dimension_numbers<[1], [0], [0], [1], [0, 0, 1, 1], [], []>} : vector<16x128xf32>, vector<128x32xf32>, vector<16x32xf32> -> vector<16x32xf32>
    %c0_4 = arith.constant 0 : index
    %c0_5 = arith.constant 0 : index
    %4 = vector.load %arg3[%c0_4, %c0_5] : memref<1x32xf32, #tpu.memory_space<vmem>>, vector<1x32xf32>
    %5 = vector.broadcast %4 : vector<1x32xf32> to vector<16x32xf32>
    %6 = arith.addf %3, %5 : vector<16x32xf32>
    %cst_6 = arith.constant 0.000000e+00 : f32
    %7 = vector.broadcast %cst_6 : f32 to vector<16x32xf32>
    %8 = arith.maximumf %6, %7 : vector<16x32xf32>
    %c0_7 = arith.constant 0 : index
    %c0_8 = arith.constant 0 : index
    %9 = vector.load %arg4[%c0_7, %c0_8] : memref<32x128xf32, #tpu.memory_space<vmem>>, vector<32x128xf32>
    %cst_9 = arith.constant dense<0.000000e+00> : vector<16x128xf32>
    %10 = tpu.matmul %8, %9, %cst_9 {dimension_numbers = #tpu.dot_dimension_numbers<[1], [0], [0], [1], [0, 0, 1, 1], [], []>} : vector<16x32xf32>, vector<32x128xf32>, vector<16x128xf32> -> vector<16x128xf32>
    %c0_10 = arith.constant 0 : index
    %c0_11 = arith.constant 0 : index
    %11 = vector.load %arg5[%c0_10, %c0_11] : memref<1x128xf32, #tpu.memory_space<vmem>>, vector<1x128xf32>
    %12 = vector.broadcast %11 : vector<1x128xf32> to vector<16x128xf32>
    %13 = arith.addf %10, %12 : vector<16x128xf32>
    %14 = arith.mulf %1, %13 : vector<16x128xf32>
    %cst_12 = arith.constant 0.000000e+00 : f32
    %15 = vector.broadcast %cst_12 : f32 to vector<22x128xf32>
    %c0_13 = arith.constant 0 : index
    %c0_14 = arith.constant 0 : index
    %16 = vector.load %arg11[%c0_13, %c0_14] : memref<22x128xf32, #tpu.memory_space<vmem>>, vector<22x128xf32>
    tpu.vector_store %arg11[%c0_13, %c0_14], %15 {strides = array<i32>} : memref<22x128xf32, #tpu.memory_space<vmem>>, vector<22x128xf32>,
    %c3 = arith.constant 3 : index
    %c0_15 = arith.constant 0 : index
    %17 = vector.load %arg11[%c3, %c0_15] : memref<22x128xf32, #tpu.memory_space<vmem>>, vector<16x128xf32>
    tpu.vector_store %arg11[%c3, %c0_15], %14 {strides = array<i32>} : memref<22x128xf32, #tpu.memory_space<vmem>>, vector<16x128xf32>,
    %cst_16 = arith.constant 0.000000e+00 : f32
    %18 = vector.broadcast %cst_16 : f32 to vector<16x32xf32>
    %c0_17 = arith.constant 0 : index
    %c0_18 = arith.constant 0 : index
    %19 = vector.load %arg11[%c0_17, %c0_18] : memref<22x128xf32, #tpu.memory_space<vmem>>, vector<16x128xf32>
    %c0_19 = arith.constant 0 : index
    %c0_20 = arith.constant 0 : index
    %c0_21 = arith.constant 0 : index
    %20 = vector.load %arg6[%c0_19, %c0_20, %c0_21] : memref<7x128x32xf32, #tpu.memory_space<vmem>>, vector<1x128x32xf32>
    %21 = vector.shape_cast %20 : vector<1x128x32xf32> to vector<128x32xf32>
    %cst_22 = arith.constant dense<0.000000e+00> : vector<16x32xf32>
    %22 = tpu.matmul %19, %21, %cst_22 {dimension_numbers = #tpu.dot_dimension_numbers<[1], [0], [0], [1], [0, 0, 1, 1], [], []>} : vector<16x128xf32>, vector<128x32xf32>, vector<16x32xf32> -> vector<16x32xf32>
    %23 = arith.addf %18, %22 : vector<16x32xf32>
    %c1 = arith.constant 1 : index
    %c0_23 = arith.constant 0 : index
    %24 = vector.load %arg11[%c1, %c0_23] : memref<22x128xf32, #tpu.memory_space<vmem>>, vector<16x128xf32>
    %c1_24 = arith.constant 1 : index
    %c0_25 = arith.constant 0 : index
    %c0_26 = arith.constant 0 : index
    %25 = vector.load %arg6[%c1_24, %c0_25, %c0_26] : memref<7x128x32xf32, #tpu.memory_space<vmem>>, vector<1x128x32xf32>
    %26 = vector.shape_cast %25 : vector<1x128x32xf32> to vector<128x32xf32>
    %cst_27 = arith.constant dense<0.000000e+00> : vector<16x32xf32>
    %27 = tpu.matmul %24, %26, %cst_27 {dimension_numbers = #tpu.dot_dimension_numbers<[1], [0], [0], [1], [0, 0, 1, 1], [], []>} : vector<16x128xf32>, vector<128x32xf32>, vector<16x32xf32> -> vector<16x32xf32>
    %28 = arith.addf %23, %27 : vector<16x32xf32>
    %c2 = arith.constant 2 : index
    %c0_28 = arith.constant 0 : index
    %29 = vector.load %arg11[%c2, %c0_28] : memref<22x128xf32, #tpu.memory_space<vmem>>, vector<16x128xf32>
    %c2_29 = arith.constant 2 : index
    %c0_30 = arith.constant 0 : index
    %c0_31 = arith.constant 0 : index
    %30 = vector.load %arg6[%c2_29, %c0_30, %c0_31] : memref<7x128x32xf32, #tpu.memory_space<vmem>>, vector<1x128x32xf32>
    %31 = vector.shape_cast %30 : vector<1x128x32xf32> to vector<128x32xf32>
    %cst_32 = arith.constant dense<0.000000e+00> : vector<16x32xf32>
    %32 = tpu.matmul %29, %31, %cst_32 {dimension_numbers = #tpu.dot_dimension_numbers<[1], [0], [0], [1], [0, 0, 1, 1], [], []>} : vector<16x128xf32>, vector<128x32xf32>, vector<16x32xf32> -> vector<16x32xf32>
    %33 = arith.addf %28, %32 : vector<16x32xf32>
    %c3_33 = arith.constant 3 : index
    %c0_34 = arith.constant 0 : index
    %34 = vector.load %arg11[%c3_33, %c0_34] : memref<22x128xf32, #tpu.memory_space<vmem>>, vector<16x128xf32>
    %c3_35 = arith.constant 3 : index
    %c0_36 = arith.constant 0 : index
    %c0_37 = arith.constant 0 : index
    %35 = vector.load %arg6[%c3_35, %c0_36, %c0_37] : memref<7x128x32xf32, #tpu.memory_space<vmem>>, vector<1x128x32xf32>
    %36 = vector.shape_cast %35 : vector<1x128x32xf32> to vector<128x32xf32>
    %cst_38 = arith.constant dense<0.000000e+00> : vector<16x32xf32>
    %37 = tpu.matmul %34, %36, %cst_38 {dimension_numbers = #tpu.dot_dimension_numbers<[1], [0], [0], [1], [0, 0, 1, 1], [], []>} : vector<16x128xf32>, vector<128x32xf32>, vector<16x32xf32> -> vector<16x32xf32>
    %38 = arith.addf %33, %37 : vector<16x32xf32>
    %c4 = arith.constant 4 : index
    %c0_39 = arith.constant 0 : index
    %39 = vector.load %arg11[%c4, %c0_39] : memref<22x128xf32, #tpu.memory_space<vmem>>, vector<16x128xf32>
    %c4_40 = arith.constant 4 : index
    %c0_41 = arith.constant 0 : index
    %c0_42 = arith.constant 0 : index
    %40 = vector.load %arg6[%c4_40, %c0_41, %c0_42] : memref<7x128x32xf32, #tpu.memory_space<vmem>>, vector<1x128x32xf32>
    %41 = vector.shape_cast %40 : vector<1x128x32xf32> to vector<128x32xf32>
    %cst_43 = arith.constant dense<0.000000e+00> : vector<16x32xf32>
    %42 = tpu.matmul %39, %41, %cst_43 {dimension_numbers = #tpu.dot_dimension_numbers<[1], [0], [0], [1], [0, 0, 1, 1], [], []>} : vector<16x128xf32>, vector<128x32xf32>, vector<16x32xf32> -> vector<16x32xf32>
    %43 = arith.addf %38, %42 : vector<16x32xf32>
    %c5 = arith.constant 5 : index
    %c0_44 = arith.constant 0 : index
    %44 = vector.load %arg11[%c5, %c0_44] : memref<22x128xf32, #tpu.memory_space<vmem>>, vector<16x128xf32>
    %c5_45 = arith.constant 5 : index
    %c0_46 = arith.constant 0 : index
    %c0_47 = arith.constant 0 : index
    %45 = vector.load %arg6[%c5_45, %c0_46, %c0_47] : memref<7x128x32xf32, #tpu.memory_space<vmem>>, vector<1x128x32xf32>
    %46 = vector.shape_cast %45 : vector<1x128x32xf32> to vector<128x32xf32>
    %cst_48 = arith.constant dense<0.000000e+00> : vector<16x32xf32>
    %47 = tpu.matmul %44, %46, %cst_48 {dimension_numbers = #tpu.dot_dimension_numbers<[1], [0], [0], [1], [0, 0, 1, 1], [], []>} : vector<16x128xf32>, vector<128x32xf32>, vector<16x32xf32> -> vector<16x32xf32>
    %48 = arith.addf %43, %47 : vector<16x32xf32>
    %c6 = arith.constant 6 : index
    %c0_49 = arith.constant 0 : index
    %49 = vector.load %arg11[%c6, %c0_49] : memref<22x128xf32, #tpu.memory_space<vmem>>, vector<16x128xf32>
    %c6_50 = arith.constant 6 : index
    %c0_51 = arith.constant 0 : index
    %c0_52 = arith.constant 0 : index
    %50 = vector.load %arg6[%c6_50, %c0_51, %c0_52] : memref<7x128x32xf32, #tpu.memory_space<vmem>>, vector<1x128x32xf32>
    %51 = vector.shape_cast %50 : vector<1x128x32xf32> to vector<128x32xf32>
    %cst_53 = arith.constant dense<0.000000e+00> : vector<16x32xf32>
    %52 = tpu.matmul %49, %51, %cst_53 {dimension_numbers = #tpu.dot_dimension_numbers<[1], [0], [0], [1], [0, 0, 1, 1], [], []>} : vector<16x128xf32>, vector<128x32xf32>, vector<16x32xf32> -> vector<16x32xf32>
    %53 = arith.addf %48, %52 : vector<16x32xf32>
    %c0_54 = arith.constant 0 : index
    %c0_55 = arith.constant 0 : index
    %54 = vector.load %arg7[%c0_54, %c0_55] : memref<1x32xf32, #tpu.memory_space<vmem>>, vector<1x32xf32>
    %55 = vector.broadcast %54 : vector<1x32xf32> to vector<16x32xf32>
    %56 = arith.addf %53, %55 : vector<16x32xf32>
    %cst_56 = arith.constant 0.000000e+00 : f32
    %57 = vector.broadcast %cst_56 : f32 to vector<16x32xf32>
    %58 = arith.maximumf %56, %57 : vector<16x32xf32>
    %cst_57 = arith.constant 0.000000e+00 : f32
    %59 = vector.broadcast %cst_57 : f32 to vector<22x32xf32>
    %c0_58 = arith.constant 0 : index
    %c0_59 = arith.constant 0 : index
    %60 = vector.load %arg12[%c0_58, %c0_59] : memref<22x32xf32, #tpu.memory_space<vmem>>, vector<22x32xf32>
    tpu.vector_store %arg12[%c0_58, %c0_59], %59 {strides = array<i32>} : memref<22x32xf32, #tpu.memory_space<vmem>>, vector<22x32xf32>,
    %c3_60 = arith.constant 3 : index
    %c0_61 = arith.constant 0 : index
    %61 = vector.load %arg12[%c3_60, %c0_61] : memref<22x32xf32, #tpu.memory_space<vmem>>, vector<16x32xf32>
    tpu.vector_store %arg12[%c3_60, %c0_61], %58 {strides = array<i32>} : memref<22x32xf32, #tpu.memory_space<vmem>>, vector<16x32xf32>,
    %cst_62 = arith.constant 0.000000e+00 : f32
    %62 = vector.broadcast %cst_62 : f32 to vector<16x128xf32>
    %c0_63 = arith.constant 0 : index
    %c0_64 = arith.constant 0 : index
    %63 = vector.load %arg12[%c0_63, %c0_64] : memref<22x32xf32, #tpu.memory_space<vmem>>, vector<16x32xf32>
    %c0_65 = arith.constant 0 : index
    %c0_66 = arith.constant 0 : index
    %c0_67 = arith.constant 0 : index
    %64 = vector.load %arg8[%c0_65, %c0_66, %c0_67] : memref<7x32x128xf32, #tpu.memory_space<vmem>>, vector<1x32x128xf32>
    %65 = vector.shape_cast %64 : vector<1x32x128xf32> to vector<32x128xf32>
    %cst_68 = arith.constant dense<0.000000e+00> : vector<16x128xf32>
    %66 = tpu.matmul %63, %65, %cst_68 {dimension_numbers = #tpu.dot_dimension_numbers<[1], [0], [0], [1], [0, 0, 1, 1], [], []>} : vector<16x32xf32>, vector<32x128xf32>, vector<16x128xf32> -> vector<16x128xf32>
    %67 = arith.addf %62, %66 : vector<16x128xf32>
    %c1_69 = arith.constant 1 : index
    %c0_70 = arith.constant 0 : index
    %68 = vector.load %arg12[%c1_69, %c0_70] : memref<22x32xf32, #tpu.memory_space<vmem>>, vector<16x32xf32>
    %c1_71 = arith.constant 1 : index
    %c0_72 = arith.constant 0 : index
    %c0_73 = arith.constant 0 : index
    %69 = vector.load %arg8[%c1_71, %c0_72, %c0_73] : memref<7x32x128xf32, #tpu.memory_space<vmem>>, vector<1x32x128xf32>
    %70 = vector.shape_cast %69 : vector<1x32x128xf32> to vector<32x128xf32>
    %cst_74 = arith.constant dense<0.000000e+00> : vector<16x128xf32>
    %71 = tpu.matmul %68, %70, %cst_74 {dimension_numbers = #tpu.dot_dimension_numbers<[1], [0], [0], [1], [0, 0, 1, 1], [], []>} : vector<16x32xf32>, vector<32x128xf32>, vector<16x128xf32> -> vector<16x128xf32>
    %72 = arith.addf %67, %71 : vector<16x128xf32>
    %c2_75 = arith.constant 2 : index
    %c0_76 = arith.constant 0 : index
    %73 = vector.load %arg12[%c2_75, %c0_76] : memref<22x32xf32, #tpu.memory_space<vmem>>, vector<16x32xf32>
    %c2_77 = arith.constant 2 : index
    %c0_78 = arith.constant 0 : index
    %c0_79 = arith.constant 0 : index
    %74 = vector.load %arg8[%c2_77, %c0_78, %c0_79] : memref<7x32x128xf32, #tpu.memory_space<vmem>>, vector<1x32x128xf32>
    %75 = vector.shape_cast %74 : vector<1x32x128xf32> to vector<32x128xf32>
    %cst_80 = arith.constant dense<0.000000e+00> : vector<16x128xf32>
    %76 = tpu.matmul %73, %75, %cst_80 {dimension_numbers = #tpu.dot_dimension_numbers<[1], [0], [0], [1], [0, 0, 1, 1], [], []>} : vector<16x32xf32>, vector<32x128xf32>, vector<16x128xf32> -> vector<16x128xf32>
    %77 = arith.addf %72, %76 : vector<16x128xf32>
    %c3_81 = arith.constant 3 : index
    %c0_82 = arith.constant 0 : index
    %78 = vector.load %arg12[%c3_81, %c0_82] : memref<22x32xf32, #tpu.memory_space<vmem>>, vector<16x32xf32>
    %c3_83 = arith.constant 3 : index
    %c0_84 = arith.constant 0 : index
    %c0_85 = arith.constant 0 : index
    %79 = vector.load %arg8[%c3_83, %c0_84, %c0_85] : memref<7x32x128xf32, #tpu.memory_space<vmem>>, vector<1x32x128xf32>
    %80 = vector.shape_cast %79 : vector<1x32x128xf32> to vector<32x128xf32>
    %cst_86 = arith.constant dense<0.000000e+00> : vector<16x128xf32>
    %81 = tpu.matmul %78, %80, %cst_86 {dimension_numbers = #tpu.dot_dimension_numbers<[1], [0], [0], [1], [0, 0, 1, 1], [], []>} : vector<16x32xf32>, vector<32x128xf32>, vector<16x128xf32> -> vector<16x128xf32>
    %82 = arith.addf %77, %81 : vector<16x128xf32>
    %c4_87 = arith.constant 4 : index
    %c0_88 = arith.constant 0 : index
    %83 = vector.load %arg12[%c4_87, %c0_88] : memref<22x32xf32, #tpu.memory_space<vmem>>, vector<16x32xf32>
    %c4_89 = arith.constant 4 : index
    %c0_90 = arith.constant 0 : index
    %c0_91 = arith.constant 0 : index
    %84 = vector.load %arg8[%c4_89, %c0_90, %c0_91] : memref<7x32x128xf32, #tpu.memory_space<vmem>>, vector<1x32x128xf32>
    %85 = vector.shape_cast %84 : vector<1x32x128xf32> to vector<32x128xf32>
    %cst_92 = arith.constant dense<0.000000e+00> : vector<16x128xf32>
    %86 = tpu.matmul %83, %85, %cst_92 {dimension_numbers = #tpu.dot_dimension_numbers<[1], [0], [0], [1], [0, 0, 1, 1], [], []>} : vector<16x32xf32>, vector<32x128xf32>, vector<16x128xf32> -> vector<16x128xf32>
    %87 = arith.addf %82, %86 : vector<16x128xf32>
    %c5_93 = arith.constant 5 : index
    %c0_94 = arith.constant 0 : index
    %88 = vector.load %arg12[%c5_93, %c0_94] : memref<22x32xf32, #tpu.memory_space<vmem>>, vector<16x32xf32>
    %c5_95 = arith.constant 5 : index
    %c0_96 = arith.constant 0 : index
    %c0_97 = arith.constant 0 : index
    %89 = vector.load %arg8[%c5_95, %c0_96, %c0_97] : memref<7x32x128xf32, #tpu.memory_space<vmem>>, vector<1x32x128xf32>
    %90 = vector.shape_cast %89 : vector<1x32x128xf32> to vector<32x128xf32>
    %cst_98 = arith.constant dense<0.000000e+00> : vector<16x128xf32>
    %91 = tpu.matmul %88, %90, %cst_98 {dimension_numbers = #tpu.dot_dimension_numbers<[1], [0], [0], [1], [0, 0, 1, 1], [], []>} : vector<16x32xf32>, vector<32x128xf32>, vector<16x128xf32> -> vector<16x128xf32>
    %92 = arith.addf %87, %91 : vector<16x128xf32>
    %c6_99 = arith.constant 6 : index
    %c0_100 = arith.constant 0 : index
    %93 = vector.load %arg12[%c6_99, %c0_100] : memref<22x32xf32, #tpu.memory_space<vmem>>, vector<16x32xf32>
    %c6_101 = arith.constant 6 : index
    %c0_102 = arith.constant 0 : index
    %c0_103 = arith.constant 0 : index
    %94 = vector.load %arg8[%c6_101, %c0_102, %c0_103] : memref<7x32x128xf32, #tpu.memory_space<vmem>>, vector<1x32x128xf32>
    %95 = vector.shape_cast %94 : vector<1x32x128xf32> to vector<32x128xf32>
    %cst_104 = arith.constant dense<0.000000e+00> : vector<16x128xf32>
    %96 = tpu.matmul %93, %95, %cst_104 {dimension_numbers = #tpu.dot_dimension_numbers<[1], [0], [0], [1], [0, 0, 1, 1], [], []>} : vector<16x32xf32>, vector<32x128xf32>, vector<16x128xf32> -> vector<16x128xf32>
    %97 = arith.addf %92, %96 : vector<16x128xf32>
    %c0_105 = arith.constant 0 : index
    %c0_106 = arith.constant 0 : index
    %98 = vector.load %arg9[%c0_105, %c0_106] : memref<1x128xf32, #tpu.memory_space<vmem>>, vector<1x128xf32>
    %99 = vector.broadcast %98 : vector<1x128xf32> to vector<16x128xf32>
    %100 = arith.addf %97, %99 : vector<16x128xf32>
    %101 = arith.negf %100 : vector<16x128xf32>
    %102 = math.exp %101 : vector<16x128xf32>
    %cst_107 = arith.constant 1.000000e+00 : f32
    %103 = vector.broadcast %cst_107 : f32 to vector<16x128xf32>
    %104 = arith.addf %103, %102 : vector<16x128xf32>
    %105 = arith.divf %103, %104 : vector<16x128xf32>
    %106 = arith.mulf %14, %105 : vector<16x128xf32>
    %c0_108 = arith.constant 0 : index
    %c0_109 = arith.constant 0 : index
    %c0_110 = arith.constant 0 : index
    %107 = vector.load %arg10[%c0_108, %c0_109, %c0_110] : memref<1x16x128xf32, #tpu.memory_space<vmem>>, vector<1x16x128xf32>
    %108 = vector.shape_cast %107 : vector<1x16x128xf32> to vector<16x128xf32>
    %109 = vector.shape_cast %106 : vector<16x128xf32> to vector<1x16x128xf32>
    tpu.vector_store %arg10[%c0_108, %c0_109, %c0_110], %109 {strides = array<i32>} : memref<1x16x128xf32, #tpu.memory_space<vmem>>, vector<1x16x128xf32>,
    return
  }
  func.func @transform_0(%arg0: i32) -> (i32, i32, i32) {
    %c0_i32 = arith.constant 0 : i32
    %c0_i32_0 = arith.constant 0 : i32
    %c0_i32_1 = arith.constant 0 : i32
    return %arg0, %c0_i32, %c0_i32_0 : i32, i32, i32
  }
  func.func @transform_1(%arg0: i32) -> (i32, i32) {
    %c0_i32 = arith.constant 0 : i32
    %c0_i32_0 = arith.constant 0 : i32
    %c0_i32_1 = arith.constant 0 : i32
    return %c0_i32, %c0_i32_0 : i32, i32
  }
  func.func @transform_2(%arg0: i32) -> (i32, i32) {
    %c0_i32 = arith.constant 0 : i32
    %c0_i32_0 = arith.constant 0 : i32
    %c0_i32_1 = arith.constant 0 : i32
    return %c0_i32, %c0_i32_0 : i32, i32
  }
  func.func @transform_3(%arg0: i32) -> (i32, i32) {
    %c0_i32 = arith.constant 0 : i32
    %c0_i32_0 = arith.constant 0 : i32
    %c0_i32_1 = arith.constant 0 : i32
    return %c0_i32, %c0_i32_0 : i32, i32
  }
  func.func @transform_4(%arg0: i32) -> (i32, i32) {
    %c0_i32 = arith.constant 0 : i32
    %c0_i32_0 = arith.constant 0 : i32
    %c0_i32_1 = arith.constant 0 : i32
    return %c0_i32, %c0_i32_0 : i32, i32
  }
  func.func @transform_5(%arg0: i32) -> (i32, i32, i32) {
    %c0_i32 = arith.constant 0 : i32
    %c0_i32_0 = arith.constant 0 : i32
    %c0_i32_1 = arith.constant 0 : i32
    %c0_i32_2 = arith.constant 0 : i32
    return %c0_i32, %c0_i32_0, %c0_i32_1 : i32, i32, i32
  }
  func.func @transform_6(%arg0: i32) -> (i32, i32) {
    %c0_i32 = arith.constant 0 : i32
    %c0_i32_0 = arith.constant 0 : i32
    %c0_i32_1 = arith.constant 0 : i32
    return %c0_i32, %c0_i32_0 : i32, i32
  }
  func.func @transform_7(%arg0: i32) -> (i32, i32, i32) {
    %c0_i32 = arith.constant 0 : i32
    %c0_i32_0 = arith.constant 0 : i32
    %c0_i32_1 = arith.constant 0 : i32
    %c0_i32_2 = arith.constant 0 : i32
    return %c0_i32, %c0_i32_0, %c0_i32_1 : i32, i32, i32
  }
  func.func @transform_8(%arg0: i32) -> (i32, i32) {
    %c0_i32 = arith.constant 0 : i32
    %c0_i32_0 = arith.constant 0 : i32
    %c0_i32_1 = arith.constant 0 : i32
    return %c0_i32, %c0_i32_0 : i32, i32
  }
  func.func @transform_9(%arg0: i32) -> (i32, i32, i32) {
    %c0_i32 = arith.constant 0 : i32
    %c0_i32_0 = arith.constant 0 : i32
    %c0_i32_1 = arith.constant 0 : i32
    return %arg0, %c0_i32, %c0_i32_0 : i32, i32, i32
  }
}

</mosaic_0001>

<llo_original>
// kernel: tpu_custom_call.1
$region0: #{tpu_custom_call.1}
  #allocation0 [shape = 'u32[]', space=smem, size = 0x4, offset = 0x4, fixed_abs, tag = 'smem constant byte address 0x4 - core index']
  #allocation1 [shape = 'u32[144,128]{1,0:T(1,128)}', space=vmem, size = 0x12000, scoped, tag = 'internal scratch']
  #allocation2 [shape = 'f32[22,128]{1,0:T(8,128)}', space=vmem, size = 0x3000, scoped, tag = 'scratch operand']
  #allocation3 [shape = 'f32[22,32]{1,0:T(8,128)}', space=vmem, size = 0x3000, scoped, tag = 'scratch operand']
  %s0 = inlined_call_operand.vmem [shape: f32[2,16,128], index: 0, kind: input, shape index: {}]
  %s1 = inlined_call_operand.vmem [shape: f32[128,32], index: 1, kind: input, shape index: {}]
  %s2 = inlined_call_operand.vmem [shape: f32[1,32], index: 2, kind: input, shape index: {}]
  %s3 = inlined_call_operand.vmem [shape: f32[32,128], index: 3, kind: input, shape index: {}]
  %s4 = inlined_call_operand.vmem [shape: f32[1,128], index: 4, kind: input, shape index: {}]
  %s5 = inlined_call_operand.vmem [shape: f32[7,128,32], index: 5, kind: input, shape index: {}]
  %s6 = inlined_call_operand.vmem [shape: f32[1,32], index: 6, kind: input, shape index: {}]
  %s7 = inlined_call_operand.vmem [shape: f32[7,32,128], index: 7, kind: input, shape index: {}]
  %s8 = inlined_call_operand.vmem [shape: f32[1,128], index: 8, kind: input, shape index: {}]
  %s9 = inlined_call_operand.hbm [shape: f32[2,16,128], index: 9, kind: output, shape index: {}]
  %s10 = sld [smem:[#allocation0]]
  $region69: #{tpu_custom_call.1} parent=0
    _
  %s12 = ssub.s32 1, %s10
  %s13 = scalar_select 0, %s12, %s10
  $region1: #{tpu_custom_call.1} parent=0
    #allocation4 [shape = 'u8[16384]{0}', space=vmem, size = 0x4000, scoped, tag = 'output window, operand 0']
    #allocation5 [shape = 's32[2]{0}', space=sflag, size = 0x8, scoped, tag = 'scoped memory for tpu_custom_call.1']
    %14 = vsyncpa [#allocation5], 0
    %s15 = scalar_lea.sflag [#allocation5], 1
    %16 = vsyncpa %s15, 0
    loop: start=0, step=1, limit=4
    $region2: #{tpu_custom_call.1} parent=1 // loop_pre_header
      _
    $region3: #{tpu_custom_call.1} parent=1 // loop_header
      %s18 = sphi 0, %s22
      %p19 = scmp.ge.s32.totalorder %s18, 4
      %s28 = sphi 0, %s30
      %s31 = sphi 0, %s28
      %s32 = sphi 0, %s31
      %s48 = sphi 0, %s32
      %s52 = sphi 0, %s52
      %s54 = sphi 0, %s52
      %s55 = sphi 0, %s54
      %s69 = sphi 0, %s55
      %s73 = sphi 0, %s73
      %s75 = sphi 0, %s73
      %s76 = sphi 0, %s75
      %s90 = sphi 0, %s76
      %s94 = sphi 0, %s94
      %s96 = sphi 0, %s94
      %s97 = sphi 0, %s96
      %s111 = sphi 0, %s97
      %s115 = sphi 0, %s115
      %s117 = sphi 0, %s115
      %s118 = sphi 0, %s117
      %s132 = sphi 0, %s118
      %s136 = sphi 0, %s136
      %s138 = sphi 0, %s136
      %s139 = sphi 0, %s138
      %s153 = sphi 0, %s139
      %s157 = sphi 0, %s157
      %s159 = sphi 0, %s157
      %s160 = sphi 0, %s159
      %s174 = sphi 0, %s160
      %s178 = sphi 0, %s178
      %s180 = sphi 0, %s178
      %s181 = sphi 0, %s180
      %s195 = sphi 0, %s181
      %s199 = sphi 0, %s199
      %s201 = sphi 0, %s199
      %s202 = sphi 0, %s201
      %s216 = sphi 0, %s202
      %s222 = sphi 0, %s224
      %s225 = sphi 0, %s222
      %s226 = sphi 0, %s225
      %s242 = sphi 0, %s226
    $region4: #{tpu_custom_call.1} parent=1 // loop_header_branch
      %21 = sbr.rel (%p19) target = $region8
    $region5: #{tpu_custom_call.1} parent=1 // loop_body
      %s23 = ssub.s32 %s18, 1
      %s24 = ssub.s32 %s18, 2
      %s25 = sadd.s32 %s18, 1
      %s26 = ssub.s32 %s18, %s25
      %p27 = scmp.eq.s32.totalorder %s26, 0
      %s29 = sadd.s32 %s28, 1
      %s30 = scalar_select %p27, %s28, %s29
      %p33 = pneg %p27
      %p34 = scmp.eq.s32.totalorder %s18, 1
      %p35 = por %p33, %p34
      %p36 = scmp.ne.s32.totalorder %s28, %s31
      %p37 = scmp.eq.s32.totalorder %s18, 0
      %p38 = por %p36, %p37
      %p39 = scmp.ne.s32.totalorder %s28, %s31
      %p40 = scmp.eq.s32.totalorder %s23, 1
      %p41 = por %p39, %p40
      %p42 = scmp.ne.s32.totalorder %s31, %s32
      %p43 = scmp.eq.s32.totalorder %s23, 0
      %p44 = por %p42, %p43
      %p45 = scmp.ne.s32.totalorder %s31, %s32
      %p46 = scmp.eq.s32.totalorder %s24, 1
      %p47 = por %p45, %p46
      %p49 = scmp.ne.s32.totalorder %s32, %s48
      %p50 = scmp.eq.s32.totalorder %s24, 0
      %p51 = por %p49, %p50
      %s53 = sadd.s32 %s52, 1
      %p56 = scmp.eq.s32.totalorder %s18, 1
      %p57 = scmp.ne.s32.totalorder %s52, %s54
      %p58 = scmp.eq.s32.totalorder %s18, 0
      %p59 = por %p57, %p58
      %p60 = scmp.ne.s32.totalorder %s52, %s54
      %p61 = scmp.eq.s32.totalorder %s23, 1
      %p62 = por %p60, %p61
      %p63 = scmp.ne.s32.totalorder %s54, %s55
      %p64 = scmp.eq.s32.totalorder %s23, 0
      %p65 = por %p63, %p64
      %p66 = scmp.ne.s32.totalorder %s54, %s55
      %p67 = scmp.eq.s32.totalorder %s24, 1
      %p68 = por %p66, %p67
      %p70 = scmp.ne.s32.totalorder %s55, %s69
      %p71 = scmp.eq.s32.totalorder %s24, 0
      %p72 = por %p70, %p71
      %s74 = sadd.s32 %s73, 1
      %p77 = scmp.eq.s32.totalorder %s18, 1
      %p78 = scmp.ne.s32.totalorder %s73, %s75
      %p79 = scmp.eq.s32.totalorder %s18, 0
      %p80 = por %p78, %p79
      %p81 = scmp.ne.s32.totalorder %s73, %s75
      %p82 = scmp.eq.s32.totalorder %s23, 1
      %p83 = por %p81, %p82
      %p84 = scmp.ne.s32.totalorder %s75, %s76
      %p85 = scmp.eq.s32.totalorder %s23, 0
      %p86 = por %p84, %p85
      %p87 = scmp.ne.s32.totalorder %s75, %s76
      %p88 = scmp.eq.s32.totalorder %s24, 1
      %p89 = por %p87, %p88
      %p91 = scmp.ne.s32.totalorder %s76, %s90
      %p92 = scmp.eq.s32.totalorder %s24, 0
      %p93 = por %p91, %p92
      %s95 = sadd.s32 %s94, 1
      %p98 = scmp.eq.s32.totalorder %s18, 1
      %p99 = scmp.ne.s32.totalorder %s94, %s96
      %p100 = scmp.eq.s32.totalorder %s18, 0
      %p101 = por %p99, %p100
      %p102 = scmp.ne.s32.totalorder %s94, %s96
      %p103 = scmp.eq.s32.totalorder %s23, 1
      %p104 = por %p102, %p103
      %p105 = scmp.ne.s32.totalorder %s96, %s97
      %p106 = scmp.eq.s32.totalorder %s23, 0
      %p107 = por %p105, %p106
      %p108 = scmp.ne.s32.totalorder %s96, %s97
      %p109 = scmp.eq.s32.totalorder %s24, 1
      %p110 = por %p108, %p109
      %p112 = scmp.ne.s32.totalorder %s97, %s111
      %p113 = scmp.eq.s32.totalorder %s24, 0
      %p114 = por %p112, %p113
      %s116 = sadd.s32 %s115, 1
      %p119 = scmp.eq.s32.totalorder %s18, 1
      %p120 = scmp.ne.s32.totalorder %s115, %s117
      %p121 = scmp.eq.s32.totalorder %s18, 0
      %p122 = por %p120, %p121
      %p123 = scmp.ne.s32.totalorder %s115, %s117
      %p124 = scmp.eq.s32.totalorder %s23, 1
      %p125 = por %p123, %p124
      %p126 = scmp.ne.s32.totalorder %s117, %s118
      %p127 = scmp.eq.s32.totalorder %s23, 0
      %p128 = por %p126, %p127
      %p129 = scmp.ne.s32.totalorder %s117, %s118
      %p130 = scmp.eq.s32.totalorder %s24, 1
      %p131 = por %p129, %p130
      %p133 = scmp.ne.s32.totalorder %s118, %s132
      %p134 = scmp.eq.s32.totalorder %s24, 0
      %p135 = por %p133, %p134
      %s137 = sadd.s32 %s136, 1
      %p140 = scmp.eq.s32.totalorder %s18, 1
      %p141 = scmp.ne.s32.totalorder %s136, %s138
      %p142 = scmp.eq.s32.totalorder %s18, 0
      %p143 = por %p141, %p142
      %p144 = scmp.ne.s32.totalorder %s136, %s138
      %p145 = scmp.eq.s32.totalorder %s23, 1
      %p146 = por %p144, %p145
      %p147 = scmp.ne.s32.totalorder %s138, %s139
      %p148 = scmp.eq.s32.totalorder %s23, 0
      %p149 = por %p147, %p148
      %p150 = scmp.ne.s32.totalorder %s138, %s139
      %p151 = scmp.eq.s32.totalorder %s24, 1
      %p152 = por %p150, %p151
      %p154 = scmp.ne.s32.totalorder %s139, %s153
      %p155 = scmp.eq.s32.totalorder %s24, 0
      %p156 = por %p154, %p155
      %s158 = sadd.s32 %s157, 1
      %p161 = scmp.eq.s32.totalorder %s18, 1
      %p162 = scmp.ne.s32.totalorder %s157, %s159
      %p163 = scmp.eq.s32.totalorder %s18, 0
      %p164 = por %p162, %p163
      %p165 = scmp.ne.s32.totalorder %s157, %s159
      %p166 = scmp.eq.s32.totalorder %s23, 1
      %p167 = por %p165, %p166
      %p168 = scmp.ne.s32.totalorder %s159, %s160
      %p169 = scmp.eq.s32.totalorder %s23, 0
      %p170 = por %p168, %p169
      %p171 = scmp.ne.s32.totalorder %s159, %s160
      %p172 = scmp.eq.s32.totalorder %s24, 1
      %p173 = por %p171, %p172
      %p175 = scmp.ne.s32.totalorder %s160, %s174
      %p176 = scmp.eq.s32.totalorder %s24, 0
      %p177 = por %p175, %p176
      %s179 = sadd.s32 %s178, 1
      %p182 = scmp.eq.s32.totalorder %s18, 1
      %p183 = scmp.ne.s32.totalorder %s178, %s180
      %p184 = scmp.eq.s32.totalorder %s18, 0
      %p185 = por %p183, %p184
      %p186 = scmp.ne.s32.totalorder %s178, %s180
      %p187 = scmp.eq.s32.totalorder %s23, 1
      %p188 = por %p186, %p187
      %p189 = scmp.ne.s32.totalorder %s180, %s181
      %p190 = scmp.eq.s32.totalorder %s23, 0
      %p191 = por %p189, %p190
      %p192 = scmp.ne.s32.totalorder %s180, %s181
      %p193 = scmp.eq.s32.totalorder %s24, 1
      %p194 = por %p192, %p193
      %p196 = scmp.ne.s32.totalorder %s181, %s195
      %p197 = scmp.eq.s32.totalorder %s24, 0
      %p198 = por %p196, %p197
      %s200 = sadd.s32 %s199, 1
      %p203 = scmp.eq.s32.totalorder %s18, 1
      %p204 = scmp.ne.s32.totalorder %s199, %s201
      %p205 = scmp.eq.s32.totalorder %s18, 0
      %p206 = por %p204, %p205
      %p207 = scmp.ne.s32.totalorder %s199, %s201
      %p208 = scmp.eq.s32.totalorder %s23, 1
      %p209 = por %p207, %p208
      %p210 = scmp.ne.s32.totalorder %s201, %s202
      %p211 = scmp.eq.s32.totalorder %s23, 0
      %p212 = por %p210, %p211
      %p213 = scmp.ne.s32.totalorder %s201, %s202
      %p214 = scmp.eq.s32.totalorder %s24, 1
      %p215 = por %p213, %p214
      %p217 = scmp.ne.s32.totalorder %s202, %s216
      %p218 = scmp.eq.s32.totalorder %s24, 0
      %p219 = por %p217, %p218
      %s220 = ssub.s32 %s18, %s25
      %p221 = scmp.eq.s32.totalorder %s220, 0
      %s223 = sadd.s32 %s222, 1
      %s224 = scalar_select %p221, %s222, %s223
      %p227 = pneg %p221
      %p228 = scmp.eq.s32.totalorder %s18, 1
      %p229 = por %p227, %p228
      %p230 = scmp.ne.s32.totalorder %s222, %s225
      %p231 = scmp.eq.s32.totalorder %s18, 0
      %p232 = por %p230, %p231
      %p233 = scmp.ne.s32.totalorder %s222, %s225
      %p234 = scmp.eq.s32.totalorder %s23, 1
      %p235 = por %p233, %p234
      %p236 = scmp.ne.s32.totalorder %s225, %s226
      %p237 = scmp.eq.s32.totalorder %s23, 0
      %p238 = por %p236, %p237
      %p239 = scmp.ne.s32.totalorder %s225, %s226
      %p240 = scmp.eq.s32.totalorder %s24, 1
      %p241 = por %p239, %p240
      %p243 = scmp.ne.s32.totalorder %s226, %s242
      %p244 = scmp.eq.s32.totalorder %s24, 0
      %p245 = por %p243, %p244
      %p246 = scmp.le.s32.totalorder 1, %s18
      %p247 = scmp.lt.s32.totalorder %s18, 3
      %p248 = pnand %p246, %p247
      %p249 = pneg %p248
      // Predicated region
      $region9: #{tpu_custom_call.1} parent=5 // pred_check
        _
      $region10: #{tpu_custom_call.1} parent=5 // pred_check_branch
        %251 = sbr.rel (%p248) target = $region12
      $region11: #{tpu_custom_call.1} parent=5 // pred_region
        %s252 = ssub.s32 %s18, 1
        // Predicated region
        $region13: #{tpu_custom_call.1} parent=11 // pred_check
          %p253 = pneg %p65
        $region14: #{tpu_custom_call.1} parent=11 // pred_check_branch
          %255 = sbr.rel (%p253) target = $region16
        $region15: #{tpu_custom_call.1} parent=11 // pred_region
          _
        $region16: #{tpu_custom_call.1} parent=11 // pred_fallthru
          _
        // Predicated region
        $region17: #{tpu_custom_call.1} parent=11 // pred_check
          %p256 = pneg %p86
        $region18: #{tpu_custom_call.1} parent=11 // pred_check_branch
          %258 = sbr.rel (%p256) target = $region20
        $region19: #{tpu_custom_call.1} parent=11 // pred_region
          _
        $region20: #{tpu_custom_call.1} parent=11 // pred_fallthru
          _
        // Predicated region
        $region21: #{tpu_custom_call.1} parent=11 // pred_check
          %p259 = pneg %p107
        $region22: #{tpu_custom_call.1} parent=11 // pred_check_branch
          %261 = sbr.rel (%p259) target = $region24
        $region23: #{tpu_custom_call.1} parent=11 // pred_region
          _
        $region24: #{tpu_custom_call.1} parent=11 // pred_fallthru
          _
        // Predicated region
        $region25: #{tpu_custom_call.1} parent=11 // pred_check
          %p262 = pneg %p128
        $region26: #{tpu_custom_call.1} parent=11 // pred_check_branch
          %264 = sbr.rel (%p262) target = $region28
        $region27: #{tpu_custom_call.1} parent=11 // pred_region
          _
        $region28: #{tpu_custom_call.1} parent=11 // pred_fallthru
          _
        // Predicated region
        $region29: #{tpu_custom_call.1} parent=11 // pred_check
          %p265 = pneg %p149
        $region30: #{tpu_custom_call.1} parent=11 // pred_check_branch
          %267 = sbr.rel (%p265) target = $region32
        $region31: #{tpu_custom_call.1} parent=11 // pred_region
          _
        $region32: #{tpu_custom_call.1} parent=11 // pred_fallthru
          _
        // Predicated region
        $region33: #{tpu_custom_call.1} parent=11 // pred_check
          %p268 = pneg %p170
        $region34: #{tpu_custom_call.1} parent=11 // pred_check_branch
          %270 = sbr.rel (%p268) target = $region36
        $region35: #{tpu_custom_call.1} parent=11 // pred_region
          _
        $region36: #{tpu_custom_call.1} parent=11 // pred_fallthru
          _
        // Predicated region
        $region37: #{tpu_custom_call.1} parent=11 // pred_check
          %p271 = pneg %p191
        $region38: #{tpu_custom_call.1} parent=11 // pred_check_branch
          %273 = sbr.rel (%p271) target = $region40
        $region39: #{tpu_custom_call.1} parent=11 // pred_region
          _
        $region40: #{tpu_custom_call.1} parent=11 // pred_fallthru
          _
        // Predicated region
        $region41: #{tpu_custom_call.1} parent=11 // pred_check
          %p274 = pneg %p212
        $region42: #{tpu_custom_call.1} parent=11 // pred_check_branch
          %276 = sbr.rel (%p274) target = $region44
        $region43: #{tpu_custom_call.1} parent=11 // pred_region
          _
        $region44: #{tpu_custom_call.1} parent=11 // pred_fallthru
          _
      $region12: #{tpu_custom_call.1} parent=5 // pred_fallthru
        _
      %p277 = scmp.lt.s32.totalorder %s18, 2
      // Predicated region
      $region45: #{tpu_custom_call.1} parent=5 // pred_check
        %p278 = pneg %p277
      $region46: #{tpu_custom_call.1} parent=5 // pred_check_branch
        %280 = sbr.rel (%p278) target = $region48
      $region47: #{tpu_custom_call.1} parent=5 // pred_region
        // Predicated region
        $region49: #{tpu_custom_call.1} parent=47 // pred_check
          %p281 = pneg %p38
        $region50: #{tpu_custom_call.1} parent=47 // pred_check_branch
          %283 = sbr.rel (%p281) target = $region52
        $region51: #{tpu_custom_call.1} parent=47 // pred_region
          %p284 = scmp.lt.s32.totalorder %s18, 1
          %s285 = scalar_select %p284, %s18, 1
          %s286 = smul.addr %s285, 2
          %s287 = smul.addr %s286, 8
          %s288 = scalar_lea.vmem %s0, %s287
        $region52: #{tpu_custom_call.1} parent=47 // pred_fallthru
          _
      $region48: #{tpu_custom_call.1} parent=5 // pred_fallthru
        _
      %p289 = scmp.le.s32.totalorder 1, %s18
      %p290 = scmp.lt.s32.totalorder %s18, 3
      %p291 = pnand %p289, %p290
      %p292 = pneg %p291
      // Predicated region
      $region53: #{tpu_custom_call.1} parent=5 // pred_check
        _
      $region54: #{tpu_custom_call.1} parent=5 // pred_check_branch
        %294 = sbr.rel (%p291) target = $region56
      $region55: #{tpu_custom_call.1} parent=5 // pred_region
        %s295 = ssub.s32 %s18, 1
        %p296 = scmp.lt.s32.totalorder %s23, 1
        %s297 = scalar_select %p296, %s23, 1
        %s298 = smul.addr %s297, 2
        %s299 = smul.addr %s298, 8
        %s300 = scalar_lea.vmem %s0, %s299
        %p301 = pneg %p44
        %p302 = pneg %p41
        %p303 = pneg %p65
        %p304 = pneg %p62
        %p305 = pneg %p86
        %p306 = pneg %p83
        %p307 = pneg %p107
        %p308 = pneg %p104
        %p309 = pneg %p128
        %p310 = pneg %p125
        %p311 = pneg %p149
        %p312 = pneg %p146
        %p313 = pneg %p170
        %p314 = pneg %p167
        %p315 = pneg %p191
        %p316 = pneg %p188
        %p317 = pneg %p212
        %p318 = pneg %p209
        %p319 = pneg %p238
        %p320 = pneg %p235
        %s321 = sand.u32 %s225, 1
        %s322 = scalar_lea.sflag [#allocation5], %s321
        %s323 = sand.u32 %s225, 1
        %s324 = smul.addr %s323, 16
        %s325 = scalar_lea.vmem [#allocation4], %s324
        %p326 = scmp.lt.s32.totalorder %s23, 1
        %s327 = scalar_select %p326, %s23, 1
        %s328 = smul.addr %s327, 2
        %s329 = smul.addr %s328, 8
        %s330 = scalar_lea.vmem %s0, %s329
        %v331 = vld [vmem:[%s330] sm:$0xff]
        %v332 = vld [vmem:[%s330 + $0x8] sm:$0xff]
        %v333 = vld [vmem:[%s1] sm:$0xff]
        %v334 = vld [vmem:[%s1 + $0x8] sm:$0xff]
        %v335 = vld [vmem:[%s1 + $0x10] sm:$0xff]
        %v336 = vld [vmem:[%s1 + $0x18] sm:$0xff]
        %v337 = vld [vmem:[%s1 + $0x20] sm:$0xff]
        %v338 = vld [vmem:[%s1 + $0x28] sm:$0xff]
        %v339 = vld [vmem:[%s1 + $0x30] sm:$0xff]
        %v340 = vld [vmem:[%s1 + $0x38] sm:$0xff]
        %v341 = vld [vmem:[%s1 + $0x40] sm:$0xff]
        %v342 = vld [vmem:[%s1 + $0x48] sm:$0xff]
        %v343 = vld [vmem:[%s1 + $0x50] sm:$0xff]
        %v344 = vld [vmem:[%s1 + $0x58] sm:$0xff]
        %v345 = vld [vmem:[%s1 + $0x60] sm:$0xff]
        %v346 = vld [vmem:[%s1 + $0x68] sm:$0xff]
        %v347 = vld [vmem:[%s1 + $0x70] sm:$0xff]
        %v348 = vld [vmem:[%s1 + $0x78] sm:$0xff]
        %v349 = vld [vmem:[%s2] sm:$0x1]
        %v351 = vlaneseq
        %v352 = vshrl.u32 %v351, 7
        %v353 = vsub.s32 0, %v352
        %v354 = vrot.slane %v349, %v353
        %356 = vmatprep.subr.mxu0 0.0
        %357 = vmatpush1.msra.mxu0 %v333
        %358 = vmatprep.subr.mxu0 0.0
        %359 = vmatpush1.msra.mxu0 %v334
        %360 = vmatprep.subr.mxu0 0.0
        %361 = vmatpush1.msra.mxu0 %v335
        %362 = vmatprep.subr.mxu0 0.0
        %363 = vmatpush1.msra.mxu0 %v336
        %364 = vmatprep.subr.mxu0 0.0
        %365 = vmatpush1.msra.mxu0 %v337
        %366 = vmatprep.subr.mxu0 0.0
        %367 = vmatpush1.msra.mxu0 %v338
        %368 = vmatprep.subr.mxu0 0.0
        %369 = vmatpush1.msra.mxu0 %v339
        %370 = vmatprep.subr.mxu0 0.0
        %371 = vmatpush1.msra.mxu0 %v340
        %372 = vmatprep.subr.mxu0 0.0
        %373 = vmatpush1.msra.mxu0 %v341
        %374 = vmatprep.subr.mxu0 0.0
        %375 = vmatpush1.msra.mxu0 %v342
        %376 = vmatprep.subr.mxu0 0.0
        %377 = vmatpush1.msra.mxu0 %v343
        %378 = vmatprep.subr.mxu0 0.0
        %379 = vmatpush1.msra.mxu0 %v344
        %380 = vmatprep.subr.mxu0 0.0
        %381 = vmatpush1.msra.mxu0 %v345
        %382 = vmatprep.subr.mxu0 0.0
        %383 = vmatpush1.msra.mxu0 %v346
        %384 = vmatprep.subr.mxu0 0.0
        %385 = vmatpush1.msra.mxu0 %v347
        %386 = vmatprep.subr.mxu0 0.0
        %387 = vmatpush1.msra.mxu0 %v348
        %388 = vmatprep.subr.mxu0 0.0
        %389 = vmatpush1.msra.mxu0 0.0
        %390 = vmatprep.subr.mxu0 0.0
        %391 = vmatpush1.msra.mxu0 0.0
        %392 = vmatprep.subr.mxu0 0.0
        %393 = vmatpush1.msra.mxu0 0.0
        %394 = vmatprep.subr.mxu0 0.0
        %395 = vmatpush1.msra.mxu0 0.0
        %396 = vmatprep.subr.mxu0 0.0
        %397 = vmatpush1.msra.mxu0 0.0
        %398 = vmatprep.subr.mxu0 0.0
        %399 = vmatpush1.msra.mxu0 0.0
        %400 = vmatprep.subr.mxu0 0.0
        %401 = vmatpush1.msra.mxu0 0.0
        %402 = vmatprep.subr.mxu0 0.0
        %403 = vmatpush1.msra.mxu0 0.0
        %404 = vmatprep.subr.mxu0 0.0
        %405 = vmatpush1.msra.mxu0 0.0
        %406 = vmatprep.subr.mxu0 0.0
        %407 = vmatpush1.msra.mxu0 0.0
        %408 = vmatprep.subr.mxu0 0.0
        %409 = vmatpush1.msra.mxu0 0.0
        %410 = vmatprep.subr.mxu0 0.0
        %411 = vmatpush1.msra.mxu0 0.0
        %412 = vmatprep.subr.mxu0 0.0
        %413 = vmatpush1.msra.mxu0 0.0
        %414 = vmatprep.subr.mxu0 0.0
        %415 = vmatpush1.msra.mxu0 0.0
        %416 = vmatprep.subr.mxu0 0.0
        %417 = vmatpush1.msra.mxu0 0.0
        %418 = vmatprep.subr.mxu0 0.0
        %419 = vmatpush1.msra.mxu0 0.0
        %420 = vmatprep.mubr.f32.mxu0 0.0
        %421 = vmatmul.mubr.f32.gmra.mrb[0].mxu0 %v331
        %v422 = vpop.f32.mrb[0].mxu0
        %v423 = vadd.f32 %v354, %v422
        %v424 = vpop.f32.mrb[0].mxu0
        %425 = vmatprep.mubr.f32.mxu0 0.0
        %426 = vmatmul.mubr.f32.gmra.mrb[0].mxu0 %v332
        %v427 = vpop.f32.mrb[0].mxu0
        %v428 = vadd.f32 %v354, %v427
        %v429 = vpop.f32.mrb[0].mxu0
        %430 = vdwg.mxu0
        %v431 = vmax.f32 %v423, 0.0
        %v432 = vmax.f32 %v428, 0.0
        %v433 = vld [vmem:[%s3] sm:$0xff]
        %v434 = vld [vmem:[%s3 + $0x8] sm:$0xff]
        %v435 = vld [vmem:[%s3 + $0x10] sm:$0xff]
        %v436 = vld [vmem:[%s3 + $0x18] sm:$0xff]
        %v437 = vld [vmem:[%s4] sm:$0x1]
        %v439 = vlaneseq
        %v440 = vshrl.u32 %v439, 7
        %v441 = vsub.s32 0, %v440
        %v442 = vrot.slane %v437, %v441
        %vm444 = vcmask 261120
        %v446 = vsel %vm444, %v431, 0
        %v449 = vsel %vm444, %v432, 0
        %451 = vmatprep.subr.mxu0 0.0
        %452 = vmatpush1.msra.mxu0 %v433
        %453 = vmatprep.subr.mxu0 0.0
        %454 = vmatpush1.msra.mxu0 %v434
        %455 = vmatprep.subr.mxu0 0.0
        %456 = vmatpush1.msra.mxu0 %v435
        %457 = vmatprep.subr.mxu0 0.0
        %458 = vmatpush1.msra.mxu0 %v436
        %459 = vmatprep.subr.mxu0 0.0
        %460 = vmatpush1.msra.mxu0 0.0
        %461 = vmatprep.subr.mxu0 0.0
        %462 = vmatpush1.msra.mxu0 0.0
        %463 = vmatprep.subr.mxu0 0.0
        %464 = vmatpush1.msra.mxu0 0.0
        %465 = vmatprep.subr.mxu0 0.0
        %466 = vmatpush1.msra.mxu0 0.0
        %467 = vmatprep.subr.mxu0 0.0
        %468 = vmatpush1.msra.mxu0 0.0
        %469 = vmatprep.subr.mxu0 0.0
        %470 = vmatpush1.msra.mxu0 0.0
        %471 = vmatprep.subr.mxu0 0.0
        %472 = vmatpush1.msra.mxu0 0.0
        %473 = vmatprep.subr.mxu0 0.0
        %474 = vmatpush1.msra.mxu0 0.0
        %475 = vmatprep.subr.mxu0 0.0
        %476 = vmatpush1.msra.mxu0 0.0
        %477 = vmatprep.subr.mxu0 0.0
        %478 = vmatpush1.msra.mxu0 0.0
        %479 = vmatprep.subr.mxu0 0.0
        %480 = vmatpush1.msra.mxu0 0.0
        %481 = vmatprep.subr.mxu0 0.0
        %482 = vmatpush1.msra.mxu0 0.0
        %483 = vmatprep.subr.mxu0 0.0
        %484 = vmatpush1.msra.mxu0 0.0
        %485 = vmatprep.subr.mxu0 0.0
        %486 = vmatpush1.msra.mxu0 0.0
        %487 = vmatprep.subr.mxu0 0.0
        %488 = vmatpush1.msra.mxu0 0.0
        %489 = vmatprep.subr.mxu0 0.0
        %490 = vmatpush1.msra.mxu0 0.0
        %491 = vmatprep.subr.mxu0 0.0
        %492 = vmatpush1.msra.mxu0 0.0
        %493 = vmatprep.subr.mxu0 0.0
        %494 = vmatpush1.msra.mxu0 0.0
        %495 = vmatprep.subr.mxu0 0.0
        %496 = vmatpush1.msra.mxu0 0.0
        %497 = vmatprep.subr.mxu0 0.0
        %498 = vmatpush1.msra.mxu0 0.0
        %499 = vmatprep.subr.mxu0 0.0
        %500 = vmatpush1.msra.mxu0 0.0
        %501 = vmatprep.subr.mxu0 0.0
        %502 = vmatpush1.msra.mxu0 0.0
        %503 = vmatprep.subr.mxu0 0.0
        %504 = vmatpush1.msra.mxu0 0.0
        %505 = vmatprep.subr.mxu0 0.0
        %506 = vmatpush1.msra.mxu0 0.0
        %507 = vmatprep.subr.mxu0 0.0
        %508 = vmatpush1.msra.mxu0 0.0
        %509 = vmatprep.subr.mxu0 0.0
        %510 = vmatpush1.msra.mxu0 0.0
        %511 = vmatprep.subr.mxu0 0.0
        %512 = vmatpush1.msra.mxu0 0.0
        %513 = vmatprep.subr.mxu0 0.0
        %514 = vmatpush1.msra.mxu0 0.0
        %515 = vmatprep.mubr.f32.mxu0 0.0
        %516 = vmatmul.mubr.f32.gmra.mrb[0].mxu0 %v446
        %v517 = vpop.f32.mrb[0].mxu0
        %v518 = vadd.f32 %v442, %v517
        %v519 = vpop.f32.mrb[0].mxu0
        %520 = vmatprep.mubr.f32.mxu0 0.0
        %521 = vmatmul.mubr.f32.gmra.mrb[0].mxu0 %v449
        %v522 = vpop.f32.mrb[0].mxu0
        %v523 = vadd.f32 %v442, %v522
        %v524 = vpop.f32.mrb[0].mxu0
        %525 = vdwg.mxu0
        %v526 = vmul.f32 %v331, %v518
        %v527 = vmul.f32 %v332, %v523
        %528 = vst [vmem:[#allocation2] sm:$0xff] 0.0
        %529 = vst [vmem:[#allocation2 + $0x8] sm:$0xff] 0.0
        %530 = vst [vmem:[#allocation2 + $0x10] sm:$0x3f] 0.0
        %531 = vst [vmem:[#allocation2 + $0x3] sm:$0xff] %v526
        %532 = vst [vmem:[#allocation2 + $0xb] sm:$0xff] %v527
        %v533 = vld [vmem:[#allocation2] sm:$0xff]
        %v534 = vld [vmem:[#allocation2 + $0x8] sm:$0xff]
        %v535 = vld [vmem:[%s5] sm:$0xff]
        %v536 = vld [vmem:[%s5 + $0x8] sm:$0xff]
        %v537 = vld [vmem:[%s5 + $0x10] sm:$0xff]
        %v538 = vld [vmem:[%s5 + $0x18] sm:$0xff]
        %v539 = vld [vmem:[%s5 + $0x20] sm:$0xff]
        %v540 = vld [vmem:[%s5 + $0x28] sm:$0xff]
        %v541 = vld [vmem:[%s5 + $0x30] sm:$0xff]
        %v542 = vld [vmem:[%s5 + $0x38] sm:$0xff]
        %v543 = vld [vmem:[%s5 + $0x40] sm:$0xff]
        %v544 = vld [vmem:[%s5 + $0x48] sm:$0xff]
        %v545 = vld [vmem:[%s5 + $0x50] sm:$0xff]
        %v546 = vld [vmem:[%s5 + $0x58] sm:$0xff]
        %v547 = vld [vmem:[%s5 + $0x60] sm:$0xff]
        %v548 = vld [vmem:[%s5 + $0x68] sm:$0xff]
        %v549 = vld [vmem:[%s5 + $0x70] sm:$0xff]
        %v550 = vld [vmem:[%s5 + $0x78] sm:$0xff]
        %v551 = vld [vmem:[#allocation2 + $0x1] sm:$0xff]
        %v552 = vld [vmem:[#allocation2 + $0x9] sm:$0xff]
        %s553 = scalar_lea.vmem %s5, 128
        %v554 = vld [vmem:[%s553] sm:$0xff]
        %v555 = vld [vmem:[%s553 + $0x8] sm:$0xff]
        %v556 = vld [vmem:[%s553 + $0x10] sm:$0xff]
        %v557 = vld [vmem:[%s553 + $0x18] sm:$0xff]
        %v558 = vld [vmem:[%s553 + $0x20] sm:$0xff]
        %v559 = vld [vmem:[%s553 + $0x28] sm:$0xff]
        %v560 = vld [vmem:[%s553 + $0x30] sm:$0xff]
        %v561 = vld [vmem:[%s553 + $0x38] sm:$0xff]
        %v562 = vld [vmem:[%s553 + $0x40] sm:$0xff]
        %v563 = vld [vmem:[%s553 + $0x48] sm:$0xff]
        %v564 = vld [vmem:[%s553 + $0x50] sm:$0xff]
        %v565 = vld [vmem:[%s553 + $0x58] sm:$0xff]
        %v566 = vld [vmem:[%s553 + $0x60] sm:$0xff]
        %v567 = vld [vmem:[%s553 + $0x68] sm:$0xff]
        %v568 = vld [vmem:[%s553 + $0x70] sm:$0xff]
        %v569 = vld [vmem:[%s553 + $0x78] sm:$0xff]
        %570 = vmatprep.subr.mxu0 0.0
        %571 = vmatpush1.msra.mxu0 %v554
        %572 = vmatprep.subr.mxu0 0.0
        %573 = vmatpush1.msra.mxu0 %v555
        %574 = vmatprep.subr.mxu0 0.0
        %575 = vmatpush1.msra.mxu0 %v556
        %576 = vmatprep.subr.mxu0 0.0
        %577 = vmatpush1.msra.mxu0 %v557
        %578 = vmatprep.subr.mxu0 0.0
        %579 = vmatpush1.msra.mxu0 %v558
        %580 = vmatprep.subr.mxu0 0.0
        %581 = vmatpush1.msra.mxu0 %v559
        %582 = vmatprep.subr.mxu0 0.0
        %583 = vmatpush1.msra.mxu0 %v560
        %584 = vmatprep.subr.mxu0 0.0
        %585 = vmatpush1.msra.mxu0 %v561
        %586 = vmatprep.subr.mxu0 0.0
        %587 = vmatpush1.msra.mxu0 %v562
        %588 = vmatprep.subr.mxu0 0.0
        %589 = vmatpush1.msra.mxu0 %v563
        %590 = vmatprep.subr.mxu0 0.0
        %591 = vmatpush1.msra.mxu0 %v564
        %592 = vmatprep.subr.mxu0 0.0
        %593 = vmatpush1.msra.mxu0 %v565
        %594 = vmatprep.subr.mxu0 0.0
        %595 = vmatpush1.msra.mxu0 %v566
        %596 = vmatprep.subr.mxu0 0.0
        %597 = vmatpush1.msra.mxu0 %v567
        %598 = vmatprep.subr.mxu0 0.0
        %599 = vmatpush1.msra.mxu0 %v568
        %600 = vmatprep.subr.mxu0 0.0
        %601 = vmatpush1.msra.mxu0 %v569
        %602 = vmatprep.subr.mxu0 0.0
        %603 = vmatpush1.msra.mxu0 0.0
        %604 = vmatprep.subr.mxu0 0.0
        %605 = vmatpush1.msra.mxu0 0.0
        %606 = vmatprep.subr.mxu0 0.0
        %607 = vmatpush1.msra.mxu0 0.0
        %608 = vmatprep.subr.mxu0 0.0
        %609 = vmatpush1.msra.mxu0 0.0
        %610 = vmatprep.subr.mxu0 0.0
        %611 = vmatpush1.msra.mxu0 0.0
        %612 = vmatprep.subr.mxu0 0.0
        %613 = vmatpush1.msra.mxu0 0.0
        %614 = vmatprep.subr.mxu0 0.0
        %615 = vmatpush1.msra.mxu0 0.0
        %616 = vmatprep.subr.mxu0 0.0
        %617 = vmatpush1.msra.mxu0 0.0
        %618 = vmatprep.subr.mxu0 0.0
        %619 = vmatpush1.msra.mxu0 0.0
        %620 = vmatprep.subr.mxu0 0.0
        %621 = vmatpush1.msra.mxu0 0.0
        %622 = vmatprep.subr.mxu0 0.0
        %623 = vmatpush1.msra.mxu0 0.0
        %624 = vmatprep.subr.mxu0 0.0
        %625 = vmatpush1.msra.mxu0 0.0
        %626 = vmatprep.subr.mxu0 0.0
        %627 = vmatpush1.msra.mxu0 0.0
        %628 = vmatprep.subr.mxu0 0.0
        %629 = vmatpush1.msra.mxu0 0.0
        %630 = vmatprep.subr.mxu0 0.0
        %631 = vmatpush1.msra.mxu0 0.0
        %632 = vmatprep.subr.mxu0 0.0
        %633 = vmatpush1.msra.mxu0 0.0
        %634 = vmatprep.mubr.f32.mxu0 0.0
        %635 = vmatmul.mubr.f32.gmra.mrb[0].mxu0 %v551
        %v636 = vpop.f32.mrb[0].mxu0
        %v637 = vadd.f32 0.0, %v636
        %v638 = vpop.f32.mrb[0].mxu0
        %639 = vmatprep.mubr.f32.mxu0 0.0
        %640 = vmatmul.mubr.f32.gmra.mrb[0].mxu0 %v552
        %v641 = vpop.f32.mrb[0].mxu0
        %v642 = vadd.f32 0.0, %v641
        %v643 = vpop.f32.mrb[0].mxu0
        %644 = vdwg.mxu0
        %645 = vmatprep.subr.mxu0 0.0
        %646 = vmatpush1.msra.mxu0 %v535
        %647 = vmatprep.subr.mxu0 0.0
        %648 = vmatpush1.msra.mxu0 %v536
        %649 = vmatprep.subr.mxu0 0.0
        %650 = vmatpush1.msra.mxu0 %v537
        %651 = vmatprep.subr.mxu0 0.0
        %652 = vmatpush1.msra.mxu0 %v538
        %653 = vmatprep.subr.mxu0 0.0
        %654 = vmatpush1.msra.mxu0 %v539
        %655 = vmatprep.subr.mxu0 0.0
        %656 = vmatpush1.msra.mxu0 %v540
        %657 = vmatprep.subr.mxu0 0.0
        %658 = vmatpush1.msra.mxu0 %v541
        %659 = vmatprep.subr.mxu0 0.0
        %660 = vmatpush1.msra.mxu0 %v542
        %661 = vmatprep.subr.mxu0 0.0
        %662 = vmatpush1.msra.mxu0 %v543
        %663 = vmatprep.subr.mxu0 0.0
        %664 = vmatpush1.msra.mxu0 %v544
        %665 = vmatprep.subr.mxu0 0.0
        %666 = vmatpush1.msra.mxu0 %v545
        %667 = vmatprep.subr.mxu0 0.0
        %668 = vmatpush1.msra.mxu0 %v546
        %669 = vmatprep.subr.mxu0 0.0
        %670 = vmatpush1.msra.mxu0 %v547
        %671 = vmatprep.subr.mxu0 0.0
        %672 = vmatpush1.msra.mxu0 %v548
        %673 = vmatprep.subr.mxu0 0.0
        %674 = vmatpush1.msra.mxu0 %v549
        %675 = vmatprep.subr.mxu0 0.0
        %676 = vmatpush1.msra.mxu0 %v550
        %677 = vmatprep.subr.mxu0 0.0
        %678 = vmatpush1.msra.mxu0 0.0
        %679 = vmatprep.subr.mxu0 0.0
        %680 = vmatpush1.msra.mxu0 0.0
        %681 = vmatprep.subr.mxu0 0.0
        %682 = vmatpush1.msra.mxu0 0.0
        %683 = vmatprep.subr.mxu0 0.0
        %684 = vmatpush1.msra.mxu0 0.0
        %685 = vmatprep.subr.mxu0 0.0
        %686 = vmatpush1.msra.mxu0 0.0
        %687 = vmatprep.subr.mxu0 0.0
        %688 = vmatpush1.msra.mxu0 0.0
        %689 = vmatprep.subr.mxu0 0.0
        %690 = vmatpush1.msra.mxu0 0.0
        %691 = vmatprep.subr.mxu0 0.0
        %692 = vmatpush1.msra.mxu0 0.0
        %693 = vmatprep.subr.mxu0 0.0
        %694 = vmatpush1.msra.mxu0 0.0
        %695 = vmatprep.subr.mxu0 0.0
        %696 = vmatpush1.msra.mxu0 0.0
        %697 = vmatprep.subr.mxu0 0.0
        %698 = vmatpush1.msra.mxu0 0.0
        %699 = vmatprep.subr.mxu0 0.0
        %700 = vmatpush1.msra.mxu0 0.0
        %701 = vmatprep.subr.mxu0 0.0
        %702 = vmatpush1.msra.mxu0 0.0
        %703 = vmatprep.subr.mxu0 0.0
        %704 = vmatpush1.msra.mxu0 0.0
        %705 = vmatprep.subr.mxu0 0.0
        %706 = vmatpush1.msra.mxu0 0.0
        %707 = vmatprep.subr.mxu0 0.0
        %708 = vmatpush1.msra.mxu0 0.0
        %709 = vmatprep.mubr.f32.mxu0 0.0
        %710 = vmatmul.mubr.f32.gmra.mrb[0].mxu0 %v533
        %v711 = vpop.f32.mrb[0].mxu0
        %v712 = vadd.f32 %v637, %v711
        %v713 = vpop.f32.mrb[0].mxu0
        %714 = vmatprep.mubr.f32.mxu0 0.0
        %715 = vmatmul.mubr.f32.gmra.mrb[0].mxu0 %v534
        %v716 = vpop.f32.mrb[0].mxu0
        %v717 = vadd.f32 %v642, %v716
        %v718 = vpop.f32.mrb[0].mxu0
        %719 = vdwg.mxu0
        %v720 = vld [vmem:[#allocation2 + $0x2] sm:$0xff]
        %v721 = vld [vmem:[#allocation2 + $0xa] sm:$0xff]
        %s722 = scalar_lea.vmem %s5, 256
        %v723 = vld [vmem:[%s722] sm:$0xff]
        %v724 = vld [vmem:[%s722 + $0x8] sm:$0xff]
        %v725 = vld [vmem:[%s722 + $0x10] sm:$0xff]
        %v726 = vld [vmem:[%s722 + $0x18] sm:$0xff]
        %v727 = vld [vmem:[%s722 + $0x20] sm:$0xff]
        %v728 = vld [vmem:[%s722 + $0x28] sm:$0xff]
        %v729 = vld [vmem:[%s722 + $0x30] sm:$0xff]
        %v730 = vld [vmem:[%s722 + $0x38] sm:$0xff]
        %v731 = vld [vmem:[%s722 + $0x40] sm:$0xff]
        %v732 = vld [vmem:[%s722 + $0x48] sm:$0xff]
        %v733 = vld [vmem:[%s722 + $0x50] sm:$0xff]
        %v734 = vld [vmem:[%s722 + $0x58] sm:$0xff]
        %v735 = vld [vmem:[%s722 + $0x60] sm:$0xff]
        %v736 = vld [vmem:[%s722 + $0x68] sm:$0xff]
        %v737 = vld [vmem:[%s722 + $0x70] sm:$0xff]
        %v738 = vld [vmem:[%s722 + $0x78] sm:$0xff]
        %739 = vmatprep.subr.mxu0 0.0
        %740 = vmatpush1.msra.mxu0 %v723
        %741 = vmatprep.subr.mxu0 0.0
        %742 = vmatpush1.msra.mxu0 %v724
        %743 = vmatprep.subr.mxu0 0.0
        %744 = vmatpush1.msra.mxu0 %v725
        %745 = vmatprep.subr.mxu0 0.0
        %746 = vmatpush1.msra.mxu0 %v726
        %747 = vmatprep.subr.mxu0 0.0
        %748 = vmatpush1.msra.mxu0 %v727
        %749 = vmatprep.subr.mxu0 0.0
        %750 = vmatpush1.msra.mxu0 %v728
        %751 = vmatprep.subr.mxu0 0.0
        %752 = vmatpush1.msra.mxu0 %v729
        %753 = vmatprep.subr.mxu0 0.0
        %754 = vmatpush1.msra.mxu0 %v730
        %755 = vmatprep.subr.mxu0 0.0
        %756 = vmatpush1.msra.mxu0 %v731
        %757 = vmatprep.subr.mxu0 0.0
        %758 = vmatpush1.msra.mxu0 %v732
        %759 = vmatprep.subr.mxu0 0.0
        %760 = vmatpush1.msra.mxu0 %v733
        %761 = vmatprep.subr.mxu0 0.0
        %762 = vmatpush1.msra.mxu0 %v734
        %763 = vmatprep.subr.mxu0 0.0
        %764 = vmatpush1.msra.mxu0 %v735
        %765 = vmatprep.subr.mxu0 0.0
        %766 = vmatpush1.msra.mxu0 %v736
        %767 = vmatprep.subr.mxu0 0.0
        %768 = vmatpush1.msra.mxu0 %v737
        %769 = vmatprep.subr.mxu0 0.0
        %770 = vmatpush1.msra.mxu0 %v738
        %771 = vmatprep.subr.mxu0 0.0
        %772 = vmatpush1.msra.mxu0 0.0
        %773 = vmatprep.subr.mxu0 0.0
        %774 = vmatpush1.msra.mxu0 0.0
        %775 = vmatprep.subr.mxu0 0.0
        %776 = vmatpush1.msra.mxu0 0.0
        %777 = vmatprep.subr.mxu0 0.0
        %778 = vmatpush1.msra.mxu0 0.0
        %779 = vmatprep.subr.mxu0 0.0
        %780 = vmatpush1.msra.mxu0 0.0
        %781 = vmatprep.subr.mxu0 0.0
        %782 = vmatpush1.msra.mxu0 0.0
        %783 = vmatprep.subr.mxu0 0.0
        %784 = vmatpush1.msra.mxu0 0.0
        %785 = vmatprep.subr.mxu0 0.0
        %786 = vmatpush1.msra.mxu0 0.0
        %787 = vmatprep.subr.mxu0 0.0
        %788 = vmatpush1.msra.mxu0 0.0
        %789 = vmatprep.subr.mxu0 0.0
        %790 = vmatpush1.msra.mxu0 0.0
        %791 = vmatprep.subr.mxu0 0.0
        %792 = vmatpush1.msra.mxu0 0.0
        %793 = vmatprep.subr.mxu0 0.0
        %794 = vmatpush1.msra.mxu0 0.0
        %795 = vmatprep.subr.mxu0 0.0
        %796 = vmatpush1.msra.mxu0 0.0
        %797 = vmatprep.subr.mxu0 0.0
        %798 = vmatpush1.msra.mxu0 0.0
        %799 = vmatprep.subr.mxu0 0.0
        %800 = vmatpush1.msra.mxu0 0.0
        %801 = vmatprep.subr.mxu0 0.0
        %802 = vmatpush1.msra.mxu0 0.0
        %803 = vmatprep.mubr.f32.mxu0 0.0
        %804 = vmatmul.mubr.f32.gmra.mrb[0].mxu0 %v720
        %v805 = vpop.f32.mrb[0].mxu0
        %v806 = vadd.f32 0.0, %v805
        %v807 = vpop.f32.mrb[0].mxu0
        %808 = vmatprep.mubr.f32.mxu0 0.0
        %809 = vmatmul.mubr.f32.gmra.mrb[0].mxu0 %v721
        %v810 = vpop.f32.mrb[0].mxu0
        %v811 = vadd.f32 0.0, %v810
        %v812 = vpop.f32.mrb[0].mxu0
        %813 = vdwg.mxu0
        %v814 = vadd.f32 %v712, %v806
        %v815 = vadd.f32 %v717, %v811
        %v816 = vld [vmem:[#allocation2 + $0x3] sm:$0xff]
        %v817 = vld [vmem:[#allocation2 + $0xb] sm:$0xff]
        %s818 = scalar_lea.vmem %s5, 384
        %v819 = vld [vmem:[%s818] sm:$0xff]
        %v820 = vld [vmem:[%s818 + $0x8] sm:$0xff]
        %v821 = vld [vmem:[%s818 + $0x10] sm:$0xff]
        %v822 = vld [vmem:[%s818 + $0x18] sm:$0xff]
        %v823 = vld [vmem:[%s818 + $0x20] sm:$0xff]
        %v824 = vld [vmem:[%s818 + $0x28] sm:$0xff]
        %v825 = vld [vmem:[%s818 + $0x30] sm:$0xff]
        %v826 = vld [vmem:[%s818 + $0x38] sm:$0xff]
        %v827 = vld [vmem:[%s818 + $0x40] sm:$0xff]
        %v828 = vld [vmem:[%s818 + $0x48] sm:$0xff]
        %v829 = vld [vmem:[%s818 + $0x50] sm:$0xff]
        %v830 = vld [vmem:[%s818 + $0x58] sm:$0xff]
        %v831 = vld [vmem:[%s818 + $0x60] sm:$0xff]
        %v832 = vld [vmem:[%s818 + $0x68] sm:$0xff]
        %v833 = vld [vmem:[%s818 + $0x70] sm:$0xff]
        %v834 = vld [vmem:[%s818 + $0x78] sm:$0xff]
        %835 = vmatprep.subr.mxu0 0.0
        %836 = vmatpush1.msra.mxu0 %v819
        %837 = vmatprep.subr.mxu0 0.0
        %838 = vmatpush1.msra.mxu0 %v820
        %839 = vmatprep.subr.mxu0 0.0
        %840 = vmatpush1.msra.mxu0 %v821
        %841 = vmatprep.subr.mxu0 0.0
        %842 = vmatpush1.msra.mxu0 %v822
        %843 = vmatprep.subr.mxu0 0.0
        %844 = vmatpush1.msra.mxu0 %v823
        %845 = vmatprep.subr.mxu0 0.0
        %846 = vmatpush1.msra.mxu0 %v824
        %847 = vmatprep.subr.mxu0 0.0
        %848 = vmatpush1.msra.mxu0 %v825
        %849 = vmatprep.subr.mxu0 0.0
        %850 = vmatpush1.msra.mxu0 %v826
        %851 = vmatprep.subr.mxu0 0.0
        %852 = vmatpush1.msra.mxu0 %v827
        %853 = vmatprep.subr.mxu0 0.0
        %854 = vmatpush1.msra.mxu0 %v828
        %855 = vmatprep.subr.mxu0 0.0
        %856 = vmatpush1.msra.mxu0 %v829
        %857 = vmatprep.subr.mxu0 0.0
        %858 = vmatpush1.msra.mxu0 %v830
        %859 = vmatprep.subr.mxu0 0.0
        %860 = vmatpush1.msra.mxu0 %v831
        %861 = vmatprep.subr.mxu0 0.0
        %862 = vmatpush1.msra.mxu0 %v832
        %863 = vmatprep.subr.mxu0 0.0
        %864 = vmatpush1.msra.mxu0 %v833
        %865 = vmatprep.subr.mxu0 0.0
        %866 = vmatpush1.msra.mxu0 %v834
        %867 = vmatprep.subr.mxu0 0.0
        %868 = vmatpush1.msra.mxu0 0.0
        %869 = vmatprep.subr.mxu0 0.0
        %870 = vmatpush1.msra.mxu0 0.0
        %871 = vmatprep.subr.mxu0 0.0
        %872 = vmatpush1.msra.mxu0 0.0
        %873 = vmatprep.subr.mxu0 0.0
        %874 = vmatpush1.msra.mxu0 0.0
        %875 = vmatprep.subr.mxu0 0.0
        %876 = vmatpush1.msra.mxu0 0.0
        %877 = vmatprep.subr.mxu0 0.0
        %878 = vmatpush1.msra.mxu0 0.0
        %879 = vmatprep.subr.mxu0 0.0
        %880 = vmatpush1.msra.mxu0 0.0
        %881 = vmatprep.subr.mxu0 0.0
        %882 = vmatpush1.msra.mxu0 0.0
        %883 = vmatprep.subr.mxu0 0.0
        %884 = vmatpush1.msra.mxu0 0.0
        %885 = vmatprep.subr.mxu0 0.0
        %886 = vmatpush1.msra.mxu0 0.0
        %887 = vmatprep.subr.mxu0 0.0
        %888 = vmatpush1.msra.mxu0 0.0
        %889 = vmatprep.subr.mxu0 0.0
        %890 = vmatpush1.msra.mxu0 0.0
        %891 = vmatprep.subr.mxu0 0.0
        %892 = vmatpush1.msra.mxu0 0.0
        %893 = vmatprep.subr.mxu0 0.0
        %894 = vmatpush1.msra.mxu0 0.0
        %895 = vmatprep.subr.mxu0 0.0
        %896 = vmatpush1.msra.mxu0 0.0
        %897 = vmatprep.subr.mxu0 0.0
        %898 = vmatpush1.msra.mxu0 0.0
        %899 = vmatprep.mubr.f32.mxu0 0.0
        %900 = vmatmul.mubr.f32.gmra.mrb[0].mxu0 %v816
        %v901 = vpop.f32.mrb[0].mxu0
        %v902 = vadd.f32 0.0, %v901
        %v903 = vpop.f32.mrb[0].mxu0
        %904 = vmatprep.mubr.f32.mxu0 0.0
        %905 = vmatmul.mubr.f32.gmra.mrb[0].mxu0 %v817
        %v906 = vpop.f32.mrb[0].mxu0
        %v907 = vadd.f32 0.0, %v906
        %v908 = vpop.f32.mrb[0].mxu0
        %909 = vdwg.mxu0
        %v910 = vadd.f32 %v814, %v902
        %v911 = vadd.f32 %v815, %v907
        %v912 = vld [vmem:[#allocation2 + $0x4] sm:$0xff]
        %v913 = vld [vmem:[#allocation2 + $0xc] sm:$0xff]
        %s914 = scalar_lea.vmem %s5, 512
        %v915 = vld [vmem:[%s914] sm:$0xff]
        %v916 = vld [vmem:[%s914 + $0x8] sm:$0xff]
        %v917 = vld [vmem:[%s914 + $0x10] sm:$0xff]
        %v918 = vld [vmem:[%s914 + $0x18] sm:$0xff]
        %v919 = vld [vmem:[%s914 + $0x20] sm:$0xff]
        %v920 = vld [vmem:[%s914 + $0x28] sm:$0xff]
        %v921 = vld [vmem:[%s914 + $0x30] sm:$0xff]
        %v922 = vld [vmem:[%s914 + $0x38] sm:$0xff]
        %v923 = vld [vmem:[%s914 + $0x40] sm:$0xff]
        %v924 = vld [vmem:[%s914 + $0x48] sm:$0xff]
        %v925 = vld [vmem:[%s914 + $0x50] sm:$0xff]
        %v926 = vld [vmem:[%s914 + $0x58] sm:$0xff]
        %v927 = vld [vmem:[%s914 + $0x60] sm:$0xff]
        %v928 = vld [vmem:[%s914 + $0x68] sm:$0xff]
        %v929 = vld [vmem:[%s914 + $0x70] sm:$0xff]
        %v930 = vld [vmem:[%s914 + $0x78] sm:$0xff]
        %931 = vmatprep.subr.mxu0 0.0
        %932 = vmatpush1.msra.mxu0 %v915
        %933 = vmatprep.subr.mxu0 0.0
        %934 = vmatpush1.msra.mxu0 %v916
        %935 = vmatprep.subr.mxu0 0.0
        %936 = vmatpush1.msra.mxu0 %v917
        %937 = vmatprep.subr.mxu0 0.0
        %938 = vmatpush1.msra.mxu0 %v918
        %939 = vmatprep.subr.mxu0 0.0
        %940 = vmatpush1.msra.mxu0 %v919
        %941 = vmatprep.subr.mxu0 0.0
        %942 = vmatpush1.msra.mxu0 %v920
        %943 = vmatprep.subr.mxu0 0.0
        %944 = vmatpush1.msra.mxu0 %v921
        %945 = vmatprep.subr.mxu0 0.0
        %946 = vmatpush1.msra.mxu0 %v922
        %947 = vmatprep.subr.mxu0 0.0
        %948 = vmatpush1.msra.mxu0 %v923
        %949 = vmatprep.subr.mxu0 0.0
        %950 = vmatpush1.msra.mxu0 %v924
        %951 = vmatprep.subr.mxu0 0.0
        %952 = vmatpush1.msra.mxu0 %v925
        %953 = vmatprep.subr.mxu0 0.0
        %954 = vmatpush1.msra.mxu0 %v926
        %955 = vmatprep.subr.mxu0 0.0
        %956 = vmatpush1.msra.mxu0 %v927
        %957 = vmatprep.subr.mxu0 0.0
        %958 = vmatpush1.msra.mxu0 %v928
        %959 = vmatprep.subr.mxu0 0.0
        %960 = vmatpush1.msra.mxu0 %v929
        %961 = vmatprep.subr.mxu0 0.0
        %962 = vmatpush1.msra.mxu0 %v930
        %963 = vmatprep.subr.mxu0 0.0
        %964 = vmatpush1.msra.mxu0 0.0
        %965 = vmatprep.subr.mxu0 0.0
        %966 = vmatpush1.msra.mxu0 0.0
        %967 = vmatprep.subr.mxu0 0.0
        %968 = vmatpush1.msra.mxu0 0.0
        %969 = vmatprep.subr.mxu0 0.0
        %970 = vmatpush1.msra.mxu0 0.0
        %971 = vmatprep.subr.mxu0 0.0
        %972 = vmatpush1.msra.mxu0 0.0
        %973 = vmatprep.subr.mxu0 0.0
        %974 = vmatpush1.msra.mxu0 0.0
        %975 = vmatprep.subr.mxu0 0.0
        %976 = vmatpush1.msra.mxu0 0.0
        %977 = vmatprep.subr.mxu0 0.0
        %978 = vmatpush1.msra.mxu0 0.0
        %979 = vmatprep.subr.mxu0 0.0
        %980 = vmatpush1.msra.mxu0 0.0
        %981 = vmatprep.subr.mxu0 0.0
        %982 = vmatpush1.msra.mxu0 0.0
        %983 = vmatprep.subr.mxu0 0.0
        %984 = vmatpush1.msra.mxu0 0.0
        %985 = vmatprep.subr.mxu0 0.0
        %986 = vmatpush1.msra.mxu0 0.0
        %987 = vmatprep.subr.mxu0 0.0
        %988 = vmatpush1.msra.mxu0 0.0
        %989 = vmatprep.subr.mxu0 0.0
        %990 = vmatpush1.msra.mxu0 0.0
        %991 = vmatprep.subr.mxu0 0.0
        %992 = vmatpush1.msra.mxu0 0.0
        %993 = vmatprep.subr.mxu0 0.0
        %994 = vmatpush1.msra.mxu0 0.0
        %995 = vmatprep.mubr.f32.mxu0 0.0
        %996 = vmatmul.mubr.f32.gmra.mrb[0].mxu0 %v912
        %v997 = vpop.f32.mrb[0].mxu0
        %v998 = vadd.f32 0.0, %v997
        %v999 = vpop.f32.mrb[0].mxu0
        %1000 = vmatprep.mubr.f32.mxu0 0.0
        %1001 = vmatmul.mubr.f32.gmra.mrb[0].mxu0 %v913
        %v1002 = vpop.f32.mrb[0].mxu0
        %v1003 = vadd.f32 0.0, %v1002
        %v1004 = vpop.f32.mrb[0].mxu0
        %1005 = vdwg.mxu0
        %v1006 = vadd.f32 %v910, %v998
        %v1007 = vadd.f32 %v911, %v1003
        %v1008 = vld [vmem:[#allocation2 + $0x5] sm:$0xff]
        %v1009 = vld [vmem:[#allocation2 + $0xd] sm:$0xff]
        %s1010 = scalar_lea.vmem %s5, 640
        %v1011 = vld [vmem:[%s1010] sm:$0xff]
        %v1012 = vld [vmem:[%s1010 + $0x8] sm:$0xff]
        %v1013 = vld [vmem:[%s1010 + $0x10] sm:$0xff]
        %v1014 = vld [vmem:[%s1010 + $0x18] sm:$0xff]
        %v1015 = vld [vmem:[%s1010 + $0x20] sm:$0xff]
        %v1016 = vld [vmem:[%s1010 + $0x28] sm:$0xff]
        %v1017 = vld [vmem:[%s1010 + $0x30] sm:$0xff]
        %v1018 = vld [vmem:[%s1010 + $0x38] sm:$0xff]
        %v1019 = vld [vmem:[%s1010 + $0x40] sm:$0xff]
        %v1020 = vld [vmem:[%s1010 + $0x48] sm:$0xff]
        %v1021 = vld [vmem:[%s1010 + $0x50] sm:$0xff]
        %v1022 = vld [vmem:[%s1010 + $0x58] sm:$0xff]
        %v1023 = vld [vmem:[%s1010 + $0x60] sm:$0xff]
        %v1024 = vld [vmem:[%s1010 + $0x68] sm:$0xff]
        %v1025 = vld [vmem:[%s1010 + $0x70] sm:$0xff]
        %v1026 = vld [vmem:[%s1010 + $0x78] sm:$0xff]
        %1027 = vmatprep.subr.mxu0 0.0
        %1028 = vmatpush1.msra.mxu0 %v1011
        %1029 = vmatprep.subr.mxu0 0.0
        %1030 = vmatpush1.msra.mxu0 %v1012
        %1031 = vmatprep.subr.mxu0 0.0
        %1032 = vmatpush1.msra.mxu0 %v1013
        %1033 = vmatprep.subr.mxu0 0.0
        %1034 = vmatpush1.msra.mxu0 %v1014
        %1035 = vmatprep.subr.mxu0 0.0
        %1036 = vmatpush1.msra.mxu0 %v1015
        %1037 = vmatprep.subr.mxu0 0.0
        %1038 = vmatpush1.msra.mxu0 %v1016
        %1039 = vmatprep.subr.mxu0 0.0
        %1040 = vmatpush1.msra.mxu0 %v1017
        %1041 = vmatprep.subr.mxu0 0.0
        %1042 = vmatpush1.msra.mxu0 %v1018
        %1043 = vmatprep.subr.mxu0 0.0
        %1044 = vmatpush1.msra.mxu0 %v1019
        %1045 = vmatprep.subr.mxu0 0.0
        %1046 = vmatpush1.msra.mxu0 %v1020
        %1047 = vmatprep.subr.mxu0 0.0
        %1048 = vmatpush1.msra.mxu0 %v1021
        %1049 = vmatprep.subr.mxu0 0.0
        %1050 = vmatpush1.msra.mxu0 %v1022
        %1051 = vmatprep.subr.mxu0 0.0
        %1052 = vmatpush1.msra.mxu0 %v1023
        %1053 = vmatprep.subr.mxu0 0.0
        %1054 = vmatpush1.msra.mxu0 %v1024
        %1055 = vmatprep.subr.mxu0 0.0
        %1056 = vmatpush1.msra.mxu0 %v1025
        %1057 = vmatprep.subr.mxu0 0.0
        %1058 = vmatpush1.msra.mxu0 %v1026
        %1059 = vmatprep.subr.mxu0 0.0
        %1060 = vmatpush1.msra.mxu0 0.0
        %1061 = vmatprep.subr.mxu0 0.0
        %1062 = vmatpush1.msra.mxu0 0.0
        %1063 = vmatprep.subr.mxu0 0.0
        %1064 = vmatpush1.msra.mxu0 0.0
        %1065 = vmatprep.subr.mxu0 0.0
        %1066 = vmatpush1.msra.mxu0 0.0
        %1067 = vmatprep.subr.mxu0 0.0
        %1068 = vmatpush1.msra.mxu0 0.0
        %1069 = vmatprep.subr.mxu0 0.0
        %1070 = vmatpush1.msra.mxu0 0.0
        %1071 = vmatprep.subr.mxu0 0.0
        %1072 = vmatpush1.msra.mxu0 0.0
        %1073 = vmatprep.subr.mxu0 0.0
        %1074 = vmatpush1.msra.mxu0 0.0
        %1075 = vmatprep.subr.mxu0 0.0
        %1076 = vmatpush1.msra.mxu0 0.0
        %1077 = vmatprep.subr.mxu0 0.0
        %1078 = vmatpush1.msra.mxu0 0.0
        %1079 = vmatprep.subr.mxu0 0.0
        %1080 = vmatpush1.msra.mxu0 0.0
        %1081 = vmatprep.subr.mxu0 0.0
        %1082 = vmatpush1.msra.mxu0 0.0
        %1083 = vmatprep.subr.mxu0 0.0
        %1084 = vmatpush1.msra.mxu0 0.0
        %1085 = vmatprep.subr.mxu0 0.0
        %1086 = vmatpush1.msra.mxu0 0.0
        %1087 = vmatprep.subr.mxu0 0.0
        %1088 = vmatpush1.msra.mxu0 0.0
        %1089 = vmatprep.subr.mxu0 0.0
        %1090 = vmatpush1.msra.mxu0 0.0
        %1091 = vmatprep.mubr.f32.mxu0 0.0
        %1092 = vmatmul.mubr.f32.gmra.mrb[0].mxu0 %v1008
        %v1093 = vpop.f32.mrb[0].mxu0
        %v1094 = vadd.f32 0.0, %v1093
        %v1095 = vpop.f32.mrb[0].mxu0
        %1096 = vmatprep.mubr.f32.mxu0 0.0
        %1097 = vmatmul.mubr.f32.gmra.mrb[0].mxu0 %v1009
        %v1098 = vpop.f32.mrb[0].mxu0
        %v1099 = vadd.f32 0.0, %v1098
        %v1100 = vpop.f32.mrb[0].mxu0
        %1101 = vdwg.mxu0
        %v1102 = vadd.f32 %v1006, %v1094
        %v1103 = vadd.f32 %v1007, %v1099
        %v1104 = vld [vmem:[#allocation2 + $0x6] sm:$0xff]
        %v1105 = vld [vmem:[#allocation2 + $0xe] sm:$0xff]
        %s1106 = scalar_lea.vmem %s5, 768
        %v1107 = vld [vmem:[%s1106] sm:$0xff]
        %v1108 = vld [vmem:[%s1106 + $0x8] sm:$0xff]
        %v1109 = vld [vmem:[%s1106 + $0x10] sm:$0xff]
        %v1110 = vld [vmem:[%s1106 + $0x18] sm:$0xff]
        %v1111 = vld [vmem:[%s1106 + $0x20] sm:$0xff]
        %v1112 = vld [vmem:[%s1106 + $0x28] sm:$0xff]
        %v1113 = vld [vmem:[%s1106 + $0x30] sm:$0xff]
        %v1114 = vld [vmem:[%s1106 + $0x38] sm:$0xff]
        %v1115 = vld [vmem:[%s1106 + $0x40] sm:$0xff]
        %v1116 = vld [vmem:[%s1106 + $0x48] sm:$0xff]
        %v1117 = vld [vmem:[%s1106 + $0x50] sm:$0xff]
        %v1118 = vld [vmem:[%s1106 + $0x58] sm:$0xff]
        %v1119 = vld [vmem:[%s1106 + $0x60] sm:$0xff]
        %v1120 = vld [vmem:[%s1106 + $0x68] sm:$0xff]
        %v1121 = vld [vmem:[%s1106 + $0x70] sm:$0xff]
        %v1122 = vld [vmem:[%s1106 + $0x78] sm:$0xff]
        %1123 = vmatprep.subr.mxu0 0.0
        %1124 = vmatpush1.msra.mxu0 %v1107
        %1125 = vmatprep.subr.mxu0 0.0
        %1126 = vmatpush1.msra.mxu0 %v1108
        %1127 = vmatprep.subr.mxu0 0.0
        %1128 = vmatpush1.msra.mxu0 %v1109
        %1129 = vmatprep.subr.mxu0 0.0
        %1130 = vmatpush1.msra.mxu0 %v1110
        %1131 = vmatprep.subr.mxu0 0.0
        %1132 = vmatpush1.msra.mxu0 %v1111
        %1133 = vmatprep.subr.mxu0 0.0
        %1134 = vmatpush1.msra.mxu0 %v1112
        %1135 = vmatprep.subr.mxu0 0.0
        %1136 = vmatpush1.msra.mxu0 %v1113
        %1137 = vmatprep.subr.mxu0 0.0
        %1138 = vmatpush1.msra.mxu0 %v1114
        %1139 = vmatprep.subr.mxu0 0.0
        %1140 = vmatpush1.msra.mxu0 %v1115
        %1141 = vmatprep.subr.mxu0 0.0
        %1142 = vmatpush1.msra.mxu0 %v1116
        %1143 = vmatprep.subr.mxu0 0.0
        %1144 = vmatpush1.msra.mxu0 %v1117
        %1145 = vmatprep.subr.mxu0 0.0
        %1146 = vmatpush1.msra.mxu0 %v1118
        %1147 = vmatprep.subr.mxu0 0.0
        %1148 = vmatpush1.msra.mxu0 %v1119
        %1149 = vmatprep.subr.mxu0 0.0
        %1150 = vmatpush1.msra.mxu0 %v1120
        %1151 = vmatprep.subr.mxu0 0.0
        %1152 = vmatpush1.msra.mxu0 %v1121
        %1153 = vmatprep.subr.mxu0 0.0
        %1154 = vmatpush1.msra.mxu0 %v1122
        %1155 = vmatprep.subr.mxu0 0.0
        %1156 = vmatpush1.msra.mxu0 0.0
        %1157 = vmatprep.subr.mxu0 0.0
        %1158 = vmatpush1.msra.mxu0 0.0
        %1159 = vmatprep.subr.mxu0 0.0
        %1160 = vmatpush1.msra.mxu0 0.0
        %1161 = vmatprep.subr.mxu0 0.0
        %1162 = vmatpush1.msra.mxu0 0.0
        %1163 = vmatprep.subr.mxu0 0.0
        %1164 = vmatpush1.msra.mxu0 0.0
        %1165 = vmatprep.subr.mxu0 0.0
        %1166 = vmatpush1.msra.mxu0 0.0
        %1167 = vmatprep.subr.mxu0 0.0
        %1168 = vmatpush1.msra.mxu0 0.0
        %1169 = vmatprep.subr.mxu0 0.0
        %1170 = vmatpush1.msra.mxu0 0.0
        %1171 = vmatprep.subr.mxu0 0.0
        %1172 = vmatpush1.msra.mxu0 0.0
        %1173 = vmatprep.subr.mxu0 0.0
        %1174 = vmatpush1.msra.mxu0 0.0
        %1175 = vmatprep.subr.mxu0 0.0
        %1176 = vmatpush1.msra.mxu0 0.0
        %1177 = vmatprep.subr.mxu0 0.0
        %1178 = vmatpush1.msra.mxu0 0.0
        %1179 = vmatprep.subr.mxu0 0.0
        %1180 = vmatpush1.msra.mxu0 0.0
        %1181 = vmatprep.subr.mxu0 0.0
        %1182 = vmatpush1.msra.mxu0 0.0
        %1183 = vmatprep.subr.mxu0 0.0
        %1184 = vmatpush1.msra.mxu0 0.0
        %1185 = vmatprep.subr.mxu0 0.0
        %1186 = vmatpush1.msra.mxu0 0.0
        %1187 = vmatprep.mubr.f32.mxu0 0.0
        %1188 = vmatmul.mubr.f32.gmra.mrb[0].mxu0 %v1104
        %v1189 = vpop.f32.mrb[0].mxu0
        %v1190 = vadd.f32 0.0, %v1189
        %v1191 = vpop.f32.mrb[0].mxu0
        %1192 = vmatprep.mubr.f32.mxu0 0.0
        %1193 = vmatmul.mubr.f32.gmra.mrb[0].mxu0 %v1105
        %v1194 = vpop.f32.mrb[0].mxu0
        %v1195 = vadd.f32 0.0, %v1194
        %v1196 = vpop.f32.mrb[0].mxu0
        %1197 = vdwg.mxu0
        %v1198 = vadd.f32 %v1102, %v1190
        %v1199 = vadd.f32 %v1103, %v1195
        %v1200 = vld [vmem:[%s6] sm:$0x1]
        %v1202 = vlaneseq
        %v1203 = vshrl.u32 %v1202, 7
        %v1204 = vsub.s32 0, %v1203
        %v1205 = vrot.slane %v1200, %v1204
        %v1207 = vadd.f32 %v1198, %v1205
        %v1208 = vadd.f32 %v1199, %v1205
        %v1209 = vmax.f32 %v1207, 0.0
        %v1210 = vmax.f32 %v1208, 0.0
        %1211 = vst.msk [vmem:[#allocation3] sm:$0xff] %vm444, 0.0
        %1212 = vst.msk [vmem:[#allocation3 + $0x8] sm:$0xff] %vm444, 0.0
        %vm1213 = vcmask 259072
        %1214 = vst.msk [vmem:[#allocation3 + $0x10] sm:$0x3f] %vm1213, 0.0
        %1215 = vst.msk [vmem:[#allocation3 + $0x3] sm:$0xff] %vm444, %v1209
        %1216 = vst.msk [vmem:[#allocation3 + $0xb] sm:$0xff] %vm444, %v1210
        %v1217 = vld [vmem:[#allocation3] sm:$0xff]
        %v1218 = vld [vmem:[#allocation3 + $0x8] sm:$0xff]
        %v1219 = vld [vmem:[%s7] sm:$0xff]
        %v1220 = vld [vmem:[%s7 + $0x8] sm:$0xff]
        %v1221 = vld [vmem:[%s7 + $0x10] sm:$0xff]
        %v1222 = vld [vmem:[%s7 + $0x18] sm:$0xff]
        %v1223 = vld [vmem:[#allocation3 + $0x1] sm:$0xff]
        %v1224 = vld [vmem:[#allocation3 + $0x9] sm:$0xff]
        %s1225 = scalar_lea.vmem %s7, 32
        %v1226 = vld [vmem:[%s1225] sm:$0xff]
        %v1227 = vld [vmem:[%s1225 + $0x8] sm:$0xff]
        %v1228 = vld [vmem:[%s1225 + $0x10] sm:$0xff]
        %v1229 = vld [vmem:[%s1225 + $0x18] sm:$0xff]
        %v1231 = vsel %vm444, %v1223, 0
        %v1234 = vsel %vm444, %v1224, 0
        %1236 = vmatprep.subr.mxu0 0.0
        %1237 = vmatpush1.msra.mxu0 %v1226
        %1238 = vmatprep.subr.mxu0 0.0
        %1239 = vmatpush1.msra.mxu0 %v1227
        %1240 = vmatprep.subr.mxu0 0.0
        %1241 = vmatpush1.msra.mxu0 %v1228
        %1242 = vmatprep.subr.mxu0 0.0
        %1243 = vmatpush1.msra.mxu0 %v1229
        %1244 = vmatprep.subr.mxu0 0.0
        %1245 = vmatpush1.msra.mxu0 0.0
        %1246 = vmatprep.subr.mxu0 0.0
        %1247 = vmatpush1.msra.mxu0 0.0
        %1248 = vmatprep.subr.mxu0 0.0
        %1249 = vmatpush1.msra.mxu0 0.0
        %1250 = vmatprep.subr.mxu0 0.0
        %1251 = vmatpush1.msra.mxu0 0.0
        %1252 = vmatprep.subr.mxu0 0.0
        %1253 = vmatpush1.msra.mxu0 0.0
        %1254 = vmatprep.subr.mxu0 0.0
        %1255 = vmatpush1.msra.mxu0 0.0
        %1256 = vmatprep.subr.mxu0 0.0
        %1257 = vmatpush1.msra.mxu0 0.0
        %1258 = vmatprep.subr.mxu0 0.0
        %1259 = vmatpush1.msra.mxu0 0.0
        %1260 = vmatprep.subr.mxu0 0.0
        %1261 = vmatpush1.msra.mxu0 0.0
        %1262 = vmatprep.subr.mxu0 0.0
        %1263 = vmatpush1.msra.mxu0 0.0
        %1264 = vmatprep.subr.mxu0 0.0
        %1265 = vmatpush1.msra.mxu0 0.0
        %1266 = vmatprep.subr.mxu0 0.0
        %1267 = vmatpush1.msra.mxu0 0.0
        %1268 = vmatprep.subr.mxu0 0.0
        %1269 = vmatpush1.msra.mxu0 0.0
        %1270 = vmatprep.subr.mxu0 0.0
        %1271 = vmatpush1.msra.mxu0 0.0
        %1272 = vmatprep.subr.mxu0 0.0
        %1273 = vmatpush1.msra.mxu0 0.0
        %1274 = vmatprep.subr.mxu0 0.0
        %1275 = vmatpush1.msra.mxu0 0.0
        %1276 = vmatprep.subr.mxu0 0.0
        %1277 = vmatpush1.msra.mxu0 0.0
        %1278 = vmatprep.subr.mxu0 0.0
        %1279 = vmatpush1.msra.mxu0 0.0
        %1280 = vmatprep.subr.mxu0 0.0
        %1281 = vmatpush1.msra.mxu0 0.0
        %1282 = vmatprep.subr.mxu0 0.0
        %1283 = vmatpush1.msra.mxu0 0.0
        %1284 = vmatprep.subr.mxu0 0.0
        %1285 = vmatpush1.msra.mxu0 0.0
        %1286 = vmatprep.subr.mxu0 0.0
        %1287 = vmatpush1.msra.mxu0 0.0
        %1288 = vmatprep.subr.mxu0 0.0
        %1289 = vmatpush1.msra.mxu0 0.0
        %1290 = vmatprep.subr.mxu0 0.0
        %1291 = vmatpush1.msra.mxu0 0.0
        %1292 = vmatprep.subr.mxu0 0.0
        %1293 = vmatpush1.msra.mxu0 0.0
        %1294 = vmatprep.subr.mxu0 0.0
        %1295 = vmatpush1.msra.mxu0 0.0
        %1296 = vmatprep.subr.mxu0 0.0
        %1297 = vmatpush1.msra.mxu0 0.0
        %1298 = vmatprep.subr.mxu0 0.0
        %1299 = vmatpush1.msra.mxu0 0.0
        %1300 = vmatprep.mubr.f32.mxu0 0.0
        %1301 = vmatmul.mubr.f32.gmra.mrb[0].mxu0 %v1231
        %v1302 = vpop.f32.mrb[0].mxu0
        %v1303 = vadd.f32 0.0, %v1302
        %v1304 = vpop.f32.mrb[0].mxu0
        %1305 = vmatprep.mubr.f32.mxu0 0.0
        %1306 = vmatmul.mubr.f32.gmra.mrb[0].mxu0 %v1234
        %v1307 = vpop.f32.mrb[0].mxu0
        %v1308 = vadd.f32 0.0, %v1307
        %v1309 = vpop.f32.mrb[0].mxu0
        %1310 = vdwg.mxu0
        %v1312 = vsel %vm444, %v1217, 0
        %v1315 = vsel %vm444, %v1218, 0
        %1317 = vmatprep.subr.mxu0 0.0
        %1318 = vmatpush1.msra.mxu0 %v1219
        %1319 = vmatprep.subr.mxu0 0.0
        %1320 = vmatpush1.msra.mxu0 %v1220
        %1321 = vmatprep.subr.mxu0 0.0
        %1322 = vmatpush1.msra.mxu0 %v1221
        %1323 = vmatprep.subr.mxu0 0.0
        %1324 = vmatpush1.msra.mxu0 %v1222
        %1325 = vmatprep.subr.mxu0 0.0
        %1326 = vmatpush1.msra.mxu0 0.0
        %1327 = vmatprep.subr.mxu0 0.0
        %1328 = vmatpush1.msra.mxu0 0.0
        %1329 = vmatprep.subr.mxu0 0.0
        %1330 = vmatpush1.msra.mxu0 0.0
        %1331 = vmatprep.subr.mxu0 0.0
        %1332 = vmatpush1.msra.mxu0 0.0
        %1333 = vmatprep.subr.mxu0 0.0
        %1334 = vmatpush1.msra.mxu0 0.0
        %1335 = vmatprep.subr.mxu0 0.0
        %1336 = vmatpush1.msra.mxu0 0.0
        %1337 = vmatprep.subr.mxu0 0.0
        %1338 = vmatpush1.msra.mxu0 0.0
        %1339 = vmatprep.subr.mxu0 0.0
        %1340 = vmatpush1.msra.mxu0 0.0
        %1341 = vmatprep.subr.mxu0 0.0
        %1342 = vmatpush1.msra.mxu0 0.0
        %1343 = vmatprep.subr.mxu0 0.0
        %1344 = vmatpush1.msra.mxu0 0.0
        %1345 = vmatprep.subr.mxu0 0.0
        %1346 = vmatpush1.msra.mxu0 0.0
        %1347 = vmatprep.subr.mxu0 0.0
        %1348 = vmatpush1.msra.mxu0 0.0
        %1349 = vmatprep.subr.mxu0 0.0
        %1350 = vmatpush1.msra.mxu0 0.0
        %1351 = vmatprep.subr.mxu0 0.0
        %1352 = vmatpush1.msra.mxu0 0.0
        %1353 = vmatprep.subr.mxu0 0.0
        %1354 = vmatpush1.msra.mxu0 0.0
        %1355 = vmatprep.subr.mxu0 0.0
        %1356 = vmatpush1.msra.mxu0 0.0
        %1357 = vmatprep.subr.mxu0 0.0
        %1358 = vmatpush1.msra.mxu0 0.0
        %1359 = vmatprep.subr.mxu0 0.0
        %1360 = vmatpush1.msra.mxu0 0.0
        %1361 = vmatprep.subr.mxu0 0.0
        %1362 = vmatpush1.msra.mxu0 0.0
        %1363 = vmatprep.subr.mxu0 0.0
        %1364 = vmatpush1.msra.mxu0 0.0
        %1365 = vmatprep.subr.mxu0 0.0
        %1366 = vmatpush1.msra.mxu0 0.0
        %1367 = vmatprep.subr.mxu0 0.0
        %1368 = vmatpush1.msra.mxu0 0.0
        %1369 = vmatprep.subr.mxu0 0.0
        %1370 = vmatpush1.msra.mxu0 0.0
        %1371 = vmatprep.subr.mxu0 0.0
        %1372 = vmatpush1.msra.mxu0 0.0
        %1373 = vmatprep.subr.mxu0 0.0
        %1374 = vmatpush1.msra.mxu0 0.0
        %1375 = vmatprep.subr.mxu0 0.0
        %1376 = vmatpush1.msra.mxu0 0.0
        %1377 = vmatprep.subr.mxu0 0.0
        %1378 = vmatpush1.msra.mxu0 0.0
        %1379 = vmatprep.subr.mxu0 0.0
        %1380 = vmatpush1.msra.mxu0 0.0
        %1381 = vmatprep.mubr.f32.mxu0 0.0
        %1382 = vmatmul.mubr.f32.gmra.mrb[0].mxu0 %v1312
        %v1383 = vpop.f32.mrb[0].mxu0
        %v1384 = vadd.f32 %v1303, %v1383
        %v1385 = vpop.f32.mrb[0].mxu0
        %1386 = vmatprep.mubr.f32.mxu0 0.0
        %1387 = vmatmul.mubr.f32.gmra.mrb[0].mxu0 %v1315
        %v1388 = vpop.f32.mrb[0].mxu0
        %v1389 = vadd.f32 %v1308, %v1388
        %v1390 = vpop.f32.mrb[0].mxu0
        %1391 = vdwg.mxu0
        %v1392 = vld [vmem:[#allocation3 + $0x2] sm:$0xff]
        %v1393 = vld [vmem:[#allocation3 + $0xa] sm:$0xff]
        %s1394 = scalar_lea.vmem %s7, 64
        %v1395 = vld [vmem:[%s1394] sm:$0xff]
        %v1396 = vld [vmem:[%s1394 + $0x8] sm:$0xff]
        %v1397 = vld [vmem:[%s1394 + $0x10] sm:$0xff]
        %v1398 = vld [vmem:[%s1394 + $0x18] sm:$0xff]
        %v1400 = vsel %vm444, %v1392, 0
        %v1403 = vsel %vm444, %v1393, 0
        %1405 = vmatprep.subr.mxu0 0.0
        %1406 = vmatpush1.msra.mxu0 %v1395
        %1407 = vmatprep.subr.mxu0 0.0
        %1408 = vmatpush1.msra.mxu0 %v1396
        %1409 = vmatprep.subr.mxu0 0.0
        %1410 = vmatpush1.msra.mxu0 %v1397
        %1411 = vmatprep.subr.mxu0 0.0
        %1412 = vmatpush1.msra.mxu0 %v1398
        %1413 = vmatprep.subr.mxu0 0.0
        %1414 = vmatpush1.msra.mxu0 0.0
        %1415 = vmatprep.subr.mxu0 0.0
        %1416 = vmatpush1.msra.mxu0 0.0
        %1417 = vmatprep.subr.mxu0 0.0
        %1418 = vmatpush1.msra.mxu0 0.0
        %1419 = vmatprep.subr.mxu0 0.0
        %1420 = vmatpush1.msra.mxu0 0.0
        %1421 = vmatprep.subr.mxu0 0.0
        %1422 = vmatpush1.msra.mxu0 0.0
        %1423 = vmatprep.subr.mxu0 0.0
        %1424 = vmatpush1.msra.mxu0 0.0
        %1425 = vmatprep.subr.mxu0 0.0
        %1426 = vmatpush1.msra.mxu0 0.0
        %1427 = vmatprep.subr.mxu0 0.0
        %1428 = vmatpush1.msra.mxu0 0.0
        %1429 = vmatprep.subr.mxu0 0.0
        %1430 = vmatpush1.msra.mxu0 0.0
        %1431 = vmatprep.subr.mxu0 0.0
        %1432 = vmatpush1.msra.mxu0 0.0
        %1433 = vmatprep.subr.mxu0 0.0
        %1434 = vmatpush1.msra.mxu0 0.0
        %1435 = vmatprep.subr.mxu0 0.0
        %1436 = vmatpush1.msra.mxu0 0.0
        %1437 = vmatprep.subr.mxu0 0.0
        %1438 = vmatpush1.msra.mxu0 0.0
        %1439 = vmatprep.subr.mxu0 0.0
        %1440 = vmatpush1.msra.mxu0 0.0
        %1441 = vmatprep.subr.mxu0 0.0
        %1442 = vmatpush1.msra.mxu0 0.0
        %1443 = vmatprep.subr.mxu0 0.0
        %1444 = vmatpush1.msra.mxu0 0.0
        %1445 = vmatprep.subr.mxu0 0.0
        %1446 = vmatpush1.msra.mxu0 0.0
        %1447 = vmatprep.subr.mxu0 0.0
        %1448 = vmatpush1.msra.mxu0 0.0
        %1449 = vmatprep.subr.mxu0 0.0
        %1450 = vmatpush1.msra.mxu0 0.0
        %1451 = vmatprep.subr.mxu0 0.0
        %1452 = vmatpush1.msra.mxu0 0.0
        %1453 = vmatprep.subr.mxu0 0.0
        %1454 = vmatpush1.msra.mxu0 0.0
        %1455 = vmatprep.subr.mxu0 0.0
        %1456 = vmatpush1.msra.mxu0 0.0
        %1457 = vmatprep.subr.mxu0 0.0
        %1458 = vmatpush1.msra.mxu0 0.0
        %1459 = vmatprep.subr.mxu0 0.0
        %1460 = vmatpush1.msra.mxu0 0.0
        %1461 = vmatprep.subr.mxu0 0.0
        %1462 = vmatpush1.msra.mxu0 0.0
        %1463 = vmatprep.subr.mxu0 0.0
        %1464 = vmatpush1.msra.mxu0 0.0
        %1465 = vmatprep.subr.mxu0 0.0
        %1466 = vmatpush1.msra.mxu0 0.0
        %1467 = vmatprep.subr.mxu0 0.0
        %1468 = vmatpush1.msra.mxu0 0.0
        %1469 = vmatprep.mubr.f32.mxu0 0.0
        %1470 = vmatmul.mubr.f32.gmra.mrb[0].mxu0 %v1400
        %v1471 = vpop.f32.mrb[0].mxu0
        %v1472 = vadd.f32 0.0, %v1471
        %v1473 = vpop.f32.mrb[0].mxu0
        %1474 = vmatprep.mubr.f32.mxu0 0.0
        %1475 = vmatmul.mubr.f32.gmra.mrb[0].mxu0 %v1403
        %v1476 = vpop.f32.mrb[0].mxu0
        %v1477 = vadd.f32 0.0, %v1476
        %v1478 = vpop.f32.mrb[0].mxu0
        %1479 = vdwg.mxu0
        %v1480 = vadd.f32 %v1384, %v1472
        %v1481 = vadd.f32 %v1389, %v1477
        %v1482 = vld [vmem:[#allocation3 + $0x3] sm:$0xff]
        %v1483 = vld [vmem:[#allocation3 + $0xb] sm:$0xff]
        %s1484 = scalar_lea.vmem %s7, 96
        %v1485 = vld [vmem:[%s1484] sm:$0xff]
        %v1486 = vld [vmem:[%s1484 + $0x8] sm:$0xff]
        %v1487 = vld [vmem:[%s1484 + $0x10] sm:$0xff]
        %v1488 = vld [vmem:[%s1484 + $0x18] sm:$0xff]
        %v1490 = vsel %vm444, %v1482, 0
        %v1493 = vsel %vm444, %v1483, 0
        %1495 = vmatprep.subr.mxu0 0.0
        %1496 = vmatpush1.msra.mxu0 %v1485
        %1497 = vmatprep.subr.mxu0 0.0
        %1498 = vmatpush1.msra.mxu0 %v1486
        %1499 = vmatprep.subr.mxu0 0.0
        %1500 = vmatpush1.msra.mxu0 %v1487
        %1501 = vmatprep.subr.mxu0 0.0
        %1502 = vmatpush1.msra.mxu0 %v1488
        %1503 = vmatprep.subr.mxu0 0.0
        %1504 = vmatpush1.msra.mxu0 0.0
        %1505 = vmatprep.subr.mxu0 0.0
        %1506 = vmatpush1.msra.mxu0 0.0
        %1507 = vmatprep.subr.mxu0 0.0
        %1508 = vmatpush1.msra.mxu0 0.0
        %1509 = vmatprep.subr.mxu0 0.0
        %1510 = vmatpush1.msra.mxu0 0.0
        %1511 = vmatprep.subr.mxu0 0.0
        %1512 = vmatpush1.msra.mxu0 0.0
        %1513 = vmatprep.subr.mxu0 0.0
        %1514 = vmatpush1.msra.mxu0 0.0
        %1515 = vmatprep.subr.mxu0 0.0
        %1516 = vmatpush1.msra.mxu0 0.0
        %1517 = vmatprep.subr.mxu0 0.0
        %1518 = vmatpush1.msra.mxu0 0.0
        %1519 = vmatprep.subr.mxu0 0.0
        %1520 = vmatpush1.msra.mxu0 0.0
        %1521 = vmatprep.subr.mxu0 0.0
        %1522 = vmatpush1.msra.mxu0 0.0
        %1523 = vmatprep.subr.mxu0 0.0
        %1524 = vmatpush1.msra.mxu0 0.0
        %1525 = vmatprep.subr.mxu0 0.0
        %1526 = vmatpush1.msra.mxu0 0.0
        %1527 = vmatprep.subr.mxu0 0.0
        %1528 = vmatpush1.msra.mxu0 0.0
        %1529 = vmatprep.subr.mxu0 0.0
        %1530 = vmatpush1.msra.mxu0 0.0
        %1531 = vmatprep.subr.mxu0 0.0
        %1532 = vmatpush1.msra.mxu0 0.0
        %1533 = vmatprep.subr.mxu0 0.0
        %1534 = vmatpush1.msra.mxu0 0.0
        %1535 = vmatprep.subr.mxu0 0.0
        %1536 = vmatpush1.msra.mxu0 0.0
        %1537 = vmatprep.subr.mxu0 0.0
        %1538 = vmatpush1.msra.mxu0 0.0
        %1539 = vmatprep.subr.mxu0 0.0
        %1540 = vmatpush1.msra.mxu0 0.0
        %1541 = vmatprep.subr.mxu0 0.0
        %1542 = vmatpush1.msra.mxu0 0.0
        %1543 = vmatprep.subr.mxu0 0.0
        %1544 = vmatpush1.msra.mxu0 0.0
        %1545 = vmatprep.subr.mxu0 0.0
        %1546 = vmatpush1.msra.mxu0 0.0
        %1547 = vmatprep.subr.mxu0 0.0
        %1548 = vmatpush1.msra.mxu0 0.0
        %1549 = vmatprep.subr.mxu0 0.0
        %1550 = vmatpush1.msra.mxu0 0.0
        %1551 = vmatprep.subr.mxu0 0.0
        %1552 = vmatpush1.msra.mxu0 0.0
        %1553 = vmatprep.subr.mxu0 0.0
        %1554 = vmatpush1.msra.mxu0 0.0
        %1555 = vmatprep.subr.mxu0 0.0
        %1556 = vmatpush1.msra.mxu0 0.0
        %1557 = vmatprep.subr.mxu0 0.0
        %1558 = vmatpush1.msra.mxu0 0.0
        %1559 = vmatprep.mubr.f32.mxu0 0.0
        %1560 = vmatmul.mubr.f32.gmra.mrb[0].mxu0 %v1490
        %v1561 = vpop.f32.mrb[0].mxu0
        %v1562 = vadd.f32 0.0, %v1561
        %v1563 = vpop.f32.mrb[0].mxu0
        %1564 = vmatprep.mubr.f32.mxu0 0.0
        %1565 = vmatmul.mubr.f32.gmra.mrb[0].mxu0 %v1493
        %v1566 = vpop.f32.mrb[0].mxu0
        %v1567 = vadd.f32 0.0, %v1566
        %v1568 = vpop.f32.mrb[0].mxu0
        %1569 = vdwg.mxu0
        %v1570 = vadd.f32 %v1480, %v1562
        %v1571 = vadd.f32 %v1481, %v1567
        %v1572 = vld [vmem:[#allocation3 + $0x4] sm:$0xff]
        %v1573 = vld [vmem:[#allocation3 + $0xc] sm:$0xff]
        %s1574 = scalar_lea.vmem %s7, 128
        %v1575 = vld [vmem:[%s1574] sm:$0xff]
        %v1576 = vld [vmem:[%s1574 + $0x8] sm:$0xff]
        %v1577 = vld [vmem:[%s1574 + $0x10] sm:$0xff]
        %v1578 = vld [vmem:[%s1574 + $0x18] sm:$0xff]
        %v1580 = vsel %vm444, %v1572, 0
        %v1583 = vsel %vm444, %v1573, 0
        %1585 = vmatprep.subr.mxu0 0.0
        %1586 = vmatpush1.msra.mxu0 %v1575
        %1587 = vmatprep.subr.mxu0 0.0
        %1588 = vmatpush1.msra.mxu0 %v1576
        %1589 = vmatprep.subr.mxu0 0.0
        %1590 = vmatpush1.msra.mxu0 %v1577
        %1591 = vmatprep.subr.mxu0 0.0
        %1592 = vmatpush1.msra.mxu0 %v1578
        %1593 = vmatprep.subr.mxu0 0.0
        %1594 = vmatpush1.msra.mxu0 0.0
        %1595 = vmatprep.subr.mxu0 0.0
        %1596 = vmatpush1.msra.mxu0 0.0
        %1597 = vmatprep.subr.mxu0 0.0
        %1598 = vmatpush1.msra.mxu0 0.0
        %1599 = vmatprep.subr.mxu0 0.0
        %1600 = vmatpush1.msra.mxu0 0.0
        %1601 = vmatprep.subr.mxu0 0.0
        %1602 = vmatpush1.msra.mxu0 0.0
        %1603 = vmatprep.subr.mxu0 0.0
        %1604 = vmatpush1.msra.mxu0 0.0
        %1605 = vmatprep.subr.mxu0 0.0
        %1606 = vmatpush1.msra.mxu0 0.0
        %1607 = vmatprep.subr.mxu0 0.0
        %1608 = vmatpush1.msra.mxu0 0.0
        %1609 = vmatprep.subr.mxu0 0.0
        %1610 = vmatpush1.msra.mxu0 0.0
        %1611 = vmatprep.subr.mxu0 0.0
        %1612 = vmatpush1.msra.mxu0 0.0
        %1613 = vmatprep.subr.mxu0 0.0
        %1614 = vmatpush1.msra.mxu0 0.0
        %1615 = vmatprep.subr.mxu0 0.0
        %1616 = vmatpush1.msra.mxu0 0.0
        %1617 = vmatprep.subr.mxu0 0.0
        %1618 = vmatpush1.msra.mxu0 0.0
        %1619 = vmatprep.subr.mxu0 0.0
        %1620 = vmatpush1.msra.mxu0 0.0
        %1621 = vmatprep.subr.mxu0 0.0
        %1622 = vmatpush1.msra.mxu0 0.0
        %1623 = vmatprep.subr.mxu0 0.0
        %1624 = vmatpush1.msra.mxu0 0.0
        %1625 = vmatprep.subr.mxu0 0.0
        %1626 = vmatpush1.msra.mxu0 0.0
        %1627 = vmatprep.subr.mxu0 0.0
        %1628 = vmatpush1.msra.mxu0 0.0
        %1629 = vmatprep.subr.mxu0 0.0
        %1630 = vmatpush1.msra.mxu0 0.0
        %1631 = vmatprep.subr.mxu0 0.0
        %1632 = vmatpush1.msra.mxu0 0.0
        %1633 = vmatprep.subr.mxu0 0.0
        %1634 = vmatpush1.msra.mxu0 0.0
        %1635 = vmatprep.subr.mxu0 0.0
        %1636 = vmatpush1.msra.mxu0 0.0
        %1637 = vmatprep.subr.mxu0 0.0
        %1638 = vmatpush1.msra.mxu0 0.0
        %1639 = vmatprep.subr.mxu0 0.0
        %1640 = vmatpush1.msra.mxu0 0.0
        %1641 = vmatprep.subr.mxu0 0.0
        %1642 = vmatpush1.msra.mxu0 0.0
        %1643 = vmatprep.subr.mxu0 0.0
        %1644 = vmatpush1.msra.mxu0 0.0
        %1645 = vmatprep.subr.mxu0 0.0
        %1646 = vmatpush1.msra.mxu0 0.0
        %1647 = vmatprep.subr.mxu0 0.0
        %1648 = vmatpush1.msra.mxu0 0.0
        %1649 = vmatprep.mubr.f32.mxu0 0.0
        %1650 = vmatmul.mubr.f32.gmra.mrb[0].mxu0 %v1580
        %v1651 = vpop.f32.mrb[0].mxu0
        %v1652 = vadd.f32 0.0, %v1651
        %v1653 = vpop.f32.mrb[0].mxu0
        %1654 = vmatprep.mubr.f32.mxu0 0.0
        %1655 = vmatmul.mubr.f32.gmra.mrb[0].mxu0 %v1583
        %v1656 = vpop.f32.mrb[0].mxu0
        %v1657 = vadd.f32 0.0, %v1656
        %v1658 = vpop.f32.mrb[0].mxu0
        %1659 = vdwg.mxu0
        %v1660 = vadd.f32 %v1570, %v1652
        %v1661 = vadd.f32 %v1571, %v1657
        %v1662 = vld [vmem:[#allocation3 + $0x5] sm:$0xff]
        %v1663 = vld [vmem:[#allocation3 + $0xd] sm:$0xff]
        %s1664 = scalar_lea.vmem %s7, 160
        %v1665 = vld [vmem:[%s1664] sm:$0xff]
        %v1666 = vld [vmem:[%s1664 + $0x8] sm:$0xff]
        %v1667 = vld [vmem:[%s1664 + $0x10] sm:$0xff]
        %v1668 = vld [vmem:[%s1664 + $0x18] sm:$0xff]
        %v1670 = vsel %vm444, %v1662, 0
        %v1673 = vsel %vm444, %v1663, 0
        %1675 = vmatprep.subr.mxu0 0.0
        %1676 = vmatpush1.msra.mxu0 %v1665
        %1677 = vmatprep.subr.mxu0 0.0
        %1678 = vmatpush1.msra.mxu0 %v1666
        %1679 = vmatprep.subr.mxu0 0.0
        %1680 = vmatpush1.msra.mxu0 %v1667
        %1681 = vmatprep.subr.mxu0 0.0
        %1682 = vmatpush1.msra.mxu0 %v1668
        %1683 = vmatprep.subr.mxu0 0.0
        %1684 = vmatpush1.msra.mxu0 0.0
        %1685 = vmatprep.subr.mxu0 0.0
        %1686 = vmatpush1.msra.mxu0 0.0
        %1687 = vmatprep.subr.mxu0 0.0
        %1688 = vmatpush1.msra.mxu0 0.0
        %1689 = vmatprep.subr.mxu0 0.0
        %1690 = vmatpush1.msra.mxu0 0.0
        %1691 = vmatprep.subr.mxu0 0.0
        %1692 = vmatpush1.msra.mxu0 0.0
        %1693 = vmatprep.subr.mxu0 0.0
        %1694 = vmatpush1.msra.mxu0 0.0
        %1695 = vmatprep.subr.mxu0 0.0
        %1696 = vmatpush1.msra.mxu0 0.0
        %1697 = vmatprep.subr.mxu0 0.0
        %1698 = vmatpush1.msra.mxu0 0.0
        %1699 = vmatprep.subr.mxu0 0.0
        %1700 = vmatpush1.msra.mxu0 0.0
        %1701 = vmatprep.subr.mxu0 0.0
        %1702 = vmatpush1.msra.mxu0 0.0
        %1703 = vmatprep.subr.mxu0 0.0
        %1704 = vmatpush1.msra.mxu0 0.0
        %1705 = vmatprep.subr.mxu0 0.0
        %1706 = vmatpush1.msra.mxu0 0.0
        %1707 = vmatprep.subr.mxu0 0.0
        %1708 = vmatpush1.msra.mxu0 0.0
        %1709 = vmatprep.subr.mxu0 0.0
        %1710 = vmatpush1.msra.mxu0 0.0
        %1711 = vmatprep.subr.mxu0 0.0
        %1712 = vmatpush1.msra.mxu0 0.0
        %1713 = vmatprep.subr.mxu0 0.0
        %1714 = vmatpush1.msra.mxu0 0.0
        %1715 = vmatprep.subr.mxu0 0.0
        %1716 = vmatpush1.msra.mxu0 0.0
        %1717 = vmatprep.subr.mxu0 0.0
        %1718 = vmatpush1.msra.mxu0 0.0
        %1719 = vmatprep.subr.mxu0 0.0
        %1720 = vmatpush1.msra.mxu0 0.0
        %1721 = vmatprep.subr.mxu0 0.0
        %1722 = vmatpush1.msra.mxu0 0.0
        %1723 = vmatprep.subr.mxu0 0.0
        %1724 = vmatpush1.msra.mxu0 0.0
        %1725 = vmatprep.subr.mxu0 0.0
        %1726 = vmatpush1.msra.mxu0 0.0
        %1727 = vmatprep.subr.mxu0 0.0
        %1728 = vmatpush1.msra.mxu0 0.0
        %1729 = vmatprep.subr.mxu0 0.0
        %1730 = vmatpush1.msra.mxu0 0.0
        %1731 = vmatprep.subr.mxu0 0.0
        %1732 = vmatpush1.msra.mxu0 0.0
        %1733 = vmatprep.subr.mxu0 0.0
        %1734 = vmatpush1.msra.mxu0 0.0
        %1735 = vmatprep.subr.mxu0 0.0
        %1736 = vmatpush1.msra.mxu0 0.0
        %1737 = vmatprep.subr.mxu0 0.0
        %1738 = vmatpush1.msra.mxu0 0.0
        %1739 = vmatprep.mubr.f32.mxu0 0.0
        %1740 = vmatmul.mubr.f32.gmra.mrb[0].mxu0 %v1670
        %v1741 = vpop.f32.mrb[0].mxu0
        %v1742 = vadd.f32 0.0, %v1741
        %v1743 = vpop.f32.mrb[0].mxu0
        %1744 = vmatprep.mubr.f32.mxu0 0.0
        %1745 = vmatmul.mubr.f32.gmra.mrb[0].mxu0 %v1673
        %v1746 = vpop.f32.mrb[0].mxu0
        %v1747 = vadd.f32 0.0, %v1746
        %v1748 = vpop.f32.mrb[0].mxu0
        %1749 = vdwg.mxu0
        %v1750 = vadd.f32 %v1660, %v1742
        %v1751 = vadd.f32 %v1661, %v1747
        %v1752 = vld [vmem:[#allocation3 + $0x6] sm:$0xff]
        %v1753 = vld [vmem:[#allocation3 + $0xe] sm:$0xff]
        %s1754 = scalar_lea.vmem %s7, 192
        %v1755 = vld [vmem:[%s1754] sm:$0xff]
        %v1756 = vld [vmem:[%s1754 + $0x8] sm:$0xff]
        %v1757 = vld [vmem:[%s1754 + $0x10] sm:$0xff]
        %v1758 = vld [vmem:[%s1754 + $0x18] sm:$0xff]
        %v1760 = vsel %vm444, %v1752, 0
        %v1763 = vsel %vm444, %v1753, 0
        %1765 = vmatprep.subr.mxu0 0.0
        %1766 = vmatpush1.msra.mxu0 %v1755
        %1767 = vmatprep.subr.mxu0 0.0
        %1768 = vmatpush1.msra.mxu0 %v1756
        %1769 = vmatprep.subr.mxu0 0.0
        %1770 = vmatpush1.msra.mxu0 %v1757
        %1771 = vmatprep.subr.mxu0 0.0
        %1772 = vmatpush1.msra.mxu0 %v1758
        %1773 = vmatprep.subr.mxu0 0.0
        %1774 = vmatpush1.msra.mxu0 0.0
        %1775 = vmatprep.subr.mxu0 0.0
        %1776 = vmatpush1.msra.mxu0 0.0
        %1777 = vmatprep.subr.mxu0 0.0
        %1778 = vmatpush1.msra.mxu0 0.0
        %1779 = vmatprep.subr.mxu0 0.0
        %1780 = vmatpush1.msra.mxu0 0.0
        %1781 = vmatprep.subr.mxu0 0.0
        %1782 = vmatpush1.msra.mxu0 0.0
        %1783 = vmatprep.subr.mxu0 0.0
        %1784 = vmatpush1.msra.mxu0 0.0
        %1785 = vmatprep.subr.mxu0 0.0
        %1786 = vmatpush1.msra.mxu0 0.0
        %1787 = vmatprep.subr.mxu0 0.0
        %1788 = vmatpush1.msra.mxu0 0.0
        %1789 = vmatprep.subr.mxu0 0.0
        %1790 = vmatpush1.msra.mxu0 0.0
        %1791 = vmatprep.subr.mxu0 0.0
        %1792 = vmatpush1.msra.mxu0 0.0
        %1793 = vmatprep.subr.mxu0 0.0
        %1794 = vmatpush1.msra.mxu0 0.0
        %1795 = vmatprep.subr.mxu0 0.0
        %1796 = vmatpush1.msra.mxu0 0.0
        %1797 = vmatprep.subr.mxu0 0.0
        %1798 = vmatpush1.msra.mxu0 0.0
        %1799 = vmatprep.subr.mxu0 0.0
        %1800 = vmatpush1.msra.mxu0 0.0
        %1801 = vmatprep.subr.mxu0 0.0
        %1802 = vmatpush1.msra.mxu0 0.0
        %1803 = vmatprep.subr.mxu0 0.0
        %1804 = vmatpush1.msra.mxu0 0.0
        %1805 = vmatprep.subr.mxu0 0.0
        %1806 = vmatpush1.msra.mxu0 0.0
        %1807 = vmatprep.subr.mxu0 0.0
        %1808 = vmatpush1.msra.mxu0 0.0
        %1809 = vmatprep.subr.mxu0 0.0
        %1810 = vmatpush1.msra.mxu0 0.0
        %1811 = vmatprep.subr.mxu0 0.0
        %1812 = vmatpush1.msra.mxu0 0.0
        %1813 = vmatprep.subr.mxu0 0.0
        %1814 = vmatpush1.msra.mxu0 0.0
        %1815 = vmatprep.subr.mxu0 0.0
        %1816 = vmatpush1.msra.mxu0 0.0
        %1817 = vmatprep.subr.mxu0 0.0
        %1818 = vmatpush1.msra.mxu0 0.0
        %1819 = vmatprep.subr.mxu0 0.0
        %1820 = vmatpush1.msra.mxu0 0.0
        %1821 = vmatprep.subr.mxu0 0.0
        %1822 = vmatpush1.msra.mxu0 0.0
        %1823 = vmatprep.subr.mxu0 0.0
        %1824 = vmatpush1.msra.mxu0 0.0
        %1825 = vmatprep.subr.mxu0 0.0
        %1826 = vmatpush1.msra.mxu0 0.0
        %1827 = vmatprep.subr.mxu0 0.0
        %1828 = vmatpush1.msra.mxu0 0.0
        %1829 = vmatprep.mubr.f32.mxu0 0.0
        %1830 = vmatmul.mubr.f32.gmra.mrb[0].mxu0 %v1760
        %v1831 = vpop.f32.mrb[0].mxu0
        %v1832 = vadd.f32 0.0, %v1831
        %v1833 = vpop.f32.mrb[0].mxu0
        %1834 = vmatprep.mubr.f32.mxu0 0.0
        %1835 = vmatmul.mubr.f32.gmra.mrb[0].mxu0 %v1763
        %v1836 = vpop.f32.mrb[0].mxu0
        %v1837 = vadd.f32 0.0, %v1836
        %v1838 = vpop.f32.mrb[0].mxu0
        %1839 = vdwg.mxu0
        %v1840 = vadd.f32 %v1750, %v1832
        %v1841 = vadd.f32 %v1751, %v1837
        %v1842 = vld [vmem:[%s8] sm:$0x1]
        %v1844 = vlaneseq
        %v1845 = vshrl.u32 %v1844, 7
        %v1846 = vsub.s32 0, %v1845
        %v1847 = vrot.slane %v1842, %v1846
        %v1849 = vadd.f32 %v1840, %v1847
        %v1850 = vadd.f32 %v1841, %v1847
        %v1851 = vxor.u32 %v1849, 2147483648
        %v1852 = vxor.u32 %v1850, 2147483648
        %v1853 = vmul.f32 %v1851, 1.442695
        %v1854 = vpow.pop %v1853
        %v1855 = vmul.f32 %v1852, 1.442695
        %v1856 = vpow.pop %v1855
        %v1857 = vadd.f32 %v1854, 1.0
        %v1858 = vadd.f32 %v1856, 1.0
        %v1859 = vrcp.pop %v1857
        %v1860 = vmul.f32 1.0, %v1859
        %v1861 = vrcp.pop %v1858
        %v1862 = vmul.f32 1.0, %v1861
        %v1863 = vmul.f32 %v526, %v1860
        %v1864 = vmul.f32 %v527, %v1862
        %1865 = vst [vmem:[%s325] sm:$0xff] %v1863
        %1866 = vst [vmem:[%s325 + $0x8] sm:$0xff] %v1864
        %s1867 = sand.u32 %s225, 1
        %s1868 = scalar_lea.sflag [#allocation5], %s1867
        %s1869 = sand.u32 %s225, 1
        %s1870 = smul.addr %s1869, 16
        %s1871 = scalar_lea.vmem [#allocation4], %s1870
        // Predicated region
        $region57: #{tpu_custom_call.1} parent=55 // pred_check
          %p1872 = pneg %p235
        $region58: #{tpu_custom_call.1} parent=55 // pred_check_branch
          %1874 = sbr.rel (%p1872) target = $region60
        $region59: #{tpu_custom_call.1} parent=55 // pred_region
          %s1876 = ssub.s32 256, 256
          %1877 = vsyncadd %s1868, %s1876
          %s1878 = smul.addr %s23, 2
          %s1879 = smul.addr %s1878, 128
          %s1880 = scalar_lea.hbm %s9, %s1879
          %s1881 = sshll.u32 %s1871, 4
          %s1882 = int_to_ptr.vmem [resolvable:$true] %s1881
          %1887 = dma.vmem_to_hbm [thread:$0]  %s1882, 256, %s1880, %s1868, 128, 128, 8
        $region60: #{tpu_custom_call.1} parent=55 // pred_fallthru
          _
      $region56: #{tpu_custom_call.1} parent=5 // pred_fallthru
        _
      %p1888 = scmp.le.s32.totalorder 2, %s18
      // Predicated region
      $region61: #{tpu_custom_call.1} parent=5 // pred_check
        %p1889 = pneg %p1888
      $region62: #{tpu_custom_call.1} parent=5 // pred_check_branch
        %1891 = sbr.rel (%p1889) target = $region64
      $region63: #{tpu_custom_call.1} parent=5 // pred_region
        %s1892 = ssub.s32 %s18, 2
        // Predicated region
        $region65: #{tpu_custom_call.1} parent=63 // pred_check
          %p1893 = pneg %p241
        $region66: #{tpu_custom_call.1} parent=63 // pred_check_branch
          %1895 = sbr.rel (%p1893) target = $region68
        $region67: #{tpu_custom_call.1} parent=63 // pred_region
          %s1896 = sand.u32 %s226, 1
          %s1897 = scalar_lea.sflag [#allocation5], %s1896
          %s1898 = sand.u32 %s226, 1
          %s1899 = smul.addr %s1898, 16
          %s1900 = scalar_lea.vmem [#allocation4], %s1899
          %1901 = dma.done %s1897, 256
        $region68: #{tpu_custom_call.1} parent=63 // pred_fallthru
          _
      $region64: #{tpu_custom_call.1} parent=5 // pred_fallthru
        _
    $region6: #{tpu_custom_call.1} parent=1 // loop_footer
      %s22 = sadd.s32 1, %s18
    $region7: #{tpu_custom_call.1} parent=1 // loop_footer_branch
      %17 = sbr.rel target = $region3
    $region8: #{tpu_custom_call.1} parent=1 // loop_exit
      _
    %1902 = vsyncpa [#allocation5], 1
    %s1903 = scalar_lea.sflag [#allocation5], 1
    %1904 = vsyncpa %s1903, 1

</llo_original>
